<compile_context>
chip_gen: v7x
topology: tpu7x:2x2x1
jax: 0.10.0
libtpu: 0.0.40
codegen_flags: <defaults>
</compile_context>

<pallas_src>
import functools

import jax
import jax.numpy as jnp
from jax.experimental import pallas as pl
from jax.experimental.pallas import tpu as pltpu


# ---------------------------------------------------------------------------
# Fused cross-attention kernel: one grid step per batch element.
# ---------------------------------------------------------------------------
def _fused_cross_attention_kernel(
    x_ref,      # (1, Nx, C)  f32 activations
    y_ref,      # (1, Ny, C)  f32 encoder memory
    wq_ref,     # (C, C)      bf16, softmax scale pre-folded
    wkv_ref,    # (C, 2C)     bf16, K columns [:C], V columns [C:]
    wp_ref,     # (C, C)      bf16
    bp_ref,     # (1, C)      f32
    o_ref,      # (1, Nx, C)  f32 output
    *,
    nhead,
):
    C = x_ref.shape[-1]
    hd = C // nhead

    # Cast activations to bf16 once; all matmuls run bf16 x bf16 -> f32 on the MXU.
    x_b = x_ref[0].astype(jnp.bfloat16)          # (Nx, C)
    y_b = y_ref[0].astype(jnp.bfloat16)          # (Ny, C)

    # Fat projections (scale already folded into wq; K/V fused into one matmul).
    q = jnp.dot(x_b, wq_ref[...], preferred_element_type=jnp.float32)     # (Nx, C)
    kv = jnp.dot(y_b, wkv_ref[...], preferred_element_type=jnp.float32)   # (Ny, 2C)

    q_b = q.astype(jnp.bfloat16)
    k_b = kv[:, :C].astype(jnp.bfloat16)         # lane-aligned split when C % 128 == 0
    v_b = kv[:, C:].astype(jnp.bfloat16)

    # Per-head attention on VMEM-resident slabs; heads are contiguous column slices.
    # nhead is small and static, so a Python loop is fine at this scale.
    head_outs = []
    for h in range(nhead):
        lo, hi = h * hd, (h + 1) * hd
        qh = q_b[:, lo:hi]                       # (Nx, hd)
        kh = k_b[:, lo:hi]                       # (Ny, hd)
        vh = v_b[:, lo:hi]                       # (Ny, hd)

        # QK^T without materializing k.T: contract the last dim of both operands.
        s = jax.lax.dot_general(
            qh, kh, (((1,), (1,)), ((), ())),
            preferred_element_type=jnp.float32,
        )                                        # (Nx, Ny) f32

        # Numerically-stable softmax in f32; normalize via EUP reciprocal (approx).
        s = s - jnp.max(s, axis=-1, keepdims=True)
        p = jnp.exp(s)
        p = p * pl.reciprocal(jnp.sum(p, axis=-1, keepdims=True), approx=True)

        head_outs.append(
            jnp.dot(p.astype(jnp.bfloat16), vh, preferred_element_type=jnp.float32)
        )                                        # (Nx, hd) f32

    # Merge heads into one lane-dense (Nx, C) slab (no masked column stores),
    # then a single output projection (+ bias) and a full-lane store.
    merged = jnp.concatenate(head_outs, axis=-1).astype(jnp.bfloat16)     # (Nx, C)
    out = jnp.dot(merged, wp_ref[...], preferred_element_type=jnp.float32)
    out = out + bp_ref[...]
    o_ref[0] = out.astype(o_ref.dtype)


# ---------------------------------------------------------------------------
# Wrapper: full Attention_Cross forward.
# ---------------------------------------------------------------------------
def attention_cross(x, y, params, *, nhead):
    B, Nx, C = x.shape
    _, Ny, _ = y.shape
    assert C % nhead == 0
    hd = C // nhead
    scale = float(hd) ** (-0.5)

    # One-time host-side weight prep: fold softmax scale into wq, cast to bf16.
    wq = (params["wq"] * scale).astype(jnp.bfloat16)        # (C, C)   == torch to_q.weight.T * scale
    wkv = params["wkv"].astype(jnp.bfloat16)                # (C, 2C)  == torch to_kv.weight.T
    wp = params["wp"].astype(jnp.bfloat16)                  # (C, C)   == torch proj.weight.T
    bp = params["bp"].reshape(1, C).astype(jnp.float32)     # (1, C)

    kernel = functools.partial(_fused_cross_attention_kernel, nhead=nhead)

    # Advisory cost estimate for XLA scheduling.
    flops = int(B * (4 * Nx * C * C + 4 * Ny * C * C + 4 * Nx * Ny * C))
    transcendentals = int(B * nhead * Nx * (Ny + 1))
    bytes_accessed = int(
        4 * (2 * B * Nx * C + B * Ny * C) + 2 * (4 * C * C) + 4 * C
    )

    # VMEM budget: blocks (x/y/out double-buffered, weights single-buffered) plus
    # in-kernel temporaries (q/kv slabs, one head's score matrix, merged slab).
    block_bytes = (
        2 * Nx * C * 4          # x block, double-buffered f32
        + 2 * Ny * C * 4        # y block
        + 2 * Nx * C * 4        # out block
        + 4 * C * C * 2         # wq + wkv + wp (bf16, Buffered(1))
        + C * 4                 # bias
    )
    temp_bytes = (
        (Nx * C + 2 * Ny * C) * (4 + 2)   # q / k / v: f32 accumulators + bf16 copies
        + 2 * Nx * Ny * 4                 # one head's scores + probs (f32)
        + Nx * C * (4 + 2 + 4)            # merged slab (f32 + bf16) + pre-cast output
    )
    vmem_limit = int(min(56 * 1024 * 1024,
                         max(2 * (block_bytes + temp_bytes), 16 * 1024 * 1024)))

    const = lambda b: (0, 0)   # constant-index weights: fetched once, single buffer

    return pl.pallas_call(
        kernel,
        out_shape=jax.ShapeDtypeStruct((B, Nx, C), x.dtype),
        grid=(B,),
        in_specs=[
            pl.BlockSpec((1, Nx, C), lambda b: (b, 0, 0)),
            pl.BlockSpec((1, Ny, C), lambda b: (b, 0, 0)),
            pl.BlockSpec((C, C), const, pipeline_mode=pl.Buffered(1)),
            pl.BlockSpec((C, 2 * C), const, pipeline_mode=pl.Buffered(1)),
            pl.BlockSpec((C, C), const, pipeline_mode=pl.Buffered(1)),
            pl.BlockSpec((1, C), const, pipeline_mode=pl.Buffered(1)),
        ],
        out_specs=pl.BlockSpec((1, Nx, C), lambda b: (b, 0, 0)),
        compiler_params=pltpu.CompilerParams(
            dimension_semantics=("parallel",),
            vmem_limit_bytes=vmem_limit,
        ),
        cost_estimate=pl.CostEstimate(
            flops=flops,
            transcendentals=transcendentals,
            bytes_accessed=bytes_accessed,
        ),
    )(x, y, wq, wkv, wp, bp)


# ---------------------------------------------------------------------------
# Pure-JAX reference (mirrors the PyTorch forward bit-for-bit in f32).
# ---------------------------------------------------------------------------
def attention_cross_ref(x, y, params, nhead):
    B, Nx, C = x.shape
    _, Ny, _ = y.shape
    hd = C // nhead
    scale = float(hd) ** (-0.5)
    q = (x @ params["wq"]).reshape(B, Nx, nhead, hd).transpose(0, 2, 1, 3)
    kv = (y @ params["wkv"]).reshape(B, Ny, 2, nhead, hd).transpose(2, 0, 3, 1, 4)
    k, v = kv[0], kv[1]
    attn = jnp.einsum("bhqd,bhkd->bhqk", q, k) * scale
    attn = jax.nn.softmax(attn, axis=-1)
    o = jnp.einsum("bhqk,bhkd->bhqd", attn, v).transpose(0, 2, 1, 3).reshape(B, Nx, C)
    return o @ params["wp"] + params["bp"]


# ---------------------------------------------------------------------------
def init_params(key, d_model):
    k1, k2, k3, k4 = jax.random.split(key, 4)
    bound = 1.0 / (d_model ** 0.5)
    return {
        # stored as (in_features, out_features) == torch weight.T
        "wq": jax.random.uniform(k1, (d_model, d_model), jnp.float32, -bound, bound),
        "wkv": jax.random.uniform(k2, (d_model, 2 * d_model), jnp.float32, -bound, bound),
        "wp": jax.random.uniform(k3, (d_model, d_model), jnp.float32, -bound, bound),
        "bp": jax.random.uniform(k4, (d_model,), jnp.float32, -bound, bound),
    }


if __name__ == "__main__":
    B, Nx, Ny, C, nhead = 2, 8, 16, 32, 8

    key = jax.random.PRNGKey(0)
    kx, ky, kp = jax.random.split(key, 3)
    x = jax.random.normal(kx, (B, Nx, C), jnp.float32)
    y = jax.random.normal(ky, (B, Ny, C), jnp.float32)
    params = init_params(kp, C)

    fwd = jax.jit(functools.partial(attention_cross, nhead=nhead))
    out = jax.block_until_ready(fwd(x, y, params))

    ref = attention_cross_ref(x, y, params, nhead)
    assert out.shape == (B, Nx, C)
    # tolerance covers bf16 MXU operands + approximate EUP reciprocal in the softmax
    assert jnp.allclose(out, ref, atol=5e-2, rtol=5e-2), float(jnp.max(jnp.abs(out - ref)))

    print("KERNEL_OK")
</pallas_src>

<mosaic_0001>
module attributes {stable_mosaic.version = 11 : i64} {
  func.func @_fused_cross_attention_kernel(%arg0: i32, %arg1: memref<1x8x32xf32, #tpu.memory_space<vmem>>, %arg2: memref<1x16x32xf32, #tpu.memory_space<vmem>>, %arg3: memref<32x32xbf16, #tpu.memory_space<vmem>>, %arg4: memref<32x64xbf16, #tpu.memory_space<vmem>>, %arg5: memref<32x32xbf16, #tpu.memory_space<vmem>>, %arg6: memref<1x32xf32, #tpu.memory_space<vmem>>, %arg7: memref<1x8x32xf32, #tpu.memory_space<vmem>>) attributes {dimension_semantics = [#tpu.dimension_semantics<parallel>], iteration_bounds = array<i64: 2>, scalar_prefetch = 0 : i64, scratch_operands = 0 : i64, tpu.core_type = #tpu.core_type<tc>, window_params = [{transform_indices = @transform_0, window_bounds = array<i64: 1, 8, 32>}, {transform_indices = @transform_1, window_bounds = array<i64: 1, 16, 32>}, {pipeline_mode = #tpu.pipeline_mode<synchronous>, transform_indices = @transform_2, window_bounds = array<i64: 32, 32>}, {pipeline_mode = #tpu.pipeline_mode<synchronous>, transform_indices = @transform_3, window_bounds = array<i64: 32, 64>}, {pipeline_mode = #tpu.pipeline_mode<synchronous>, transform_indices = @transform_4, window_bounds = array<i64: 32, 32>}, {pipeline_mode = #tpu.pipeline_mode<synchronous>, transform_indices = @transform_5, window_bounds = array<i64: 1, 32>}, {transform_indices = @transform_6, window_bounds = array<i64: 1, 8, 32>}]} {
    %c0 = arith.constant 0 : index
    %c0_0 = arith.constant 0 : index
    %c0_1 = arith.constant 0 : index
    %0 = vector.load %arg1[%c0, %c0_0, %c0_1] : memref<1x8x32xf32, #tpu.memory_space<vmem>>, vector<1x8x32xf32>
    %1 = vector.shape_cast %0 : vector<1x8x32xf32> to vector<8x32xf32>
    %2 = arith.truncf %1 : vector<8x32xf32> to vector<8x32xbf16>
    %c0_2 = arith.constant 0 : index
    %c0_3 = arith.constant 0 : index
    %c0_4 = arith.constant 0 : index
    %3 = vector.load %arg2[%c0_2, %c0_3, %c0_4] : memref<1x16x32xf32, #tpu.memory_space<vmem>>, vector<1x16x32xf32>
    %4 = vector.shape_cast %3 : vector<1x16x32xf32> to vector<16x32xf32>
    %5 = arith.truncf %4 : vector<16x32xf32> to vector<16x32xbf16>
    %c0_5 = arith.constant 0 : index
    %c0_6 = arith.constant 0 : index
    %6 = vector.load %arg3[%c0_5, %c0_6] : memref<32x32xbf16, #tpu.memory_space<vmem>>, vector<32x32xbf16>
    %cst = arith.constant dense<0.000000e+00> : vector<8x32xf32>
    %7 = tpu.matmul %2, %6, %cst {dimension_numbers = #tpu.dot_dimension_numbers<[1], [0], [0], [1], [0, 0, 1, 1], [], []>} : vector<8x32xbf16>, vector<32x32xbf16>, vector<8x32xf32> -> vector<8x32xf32>
    %c0_7 = arith.constant 0 : index
    %c0_8 = arith.constant 0 : index
    %8 = vector.load %arg4[%c0_7, %c0_8] : memref<32x64xbf16, #tpu.memory_space<vmem>>, vector<32x64xbf16>
    %cst_9 = arith.constant dense<0.000000e+00> : vector<16x64xf32>
    %9 = tpu.matmul %5, %8, %cst_9 {dimension_numbers = #tpu.dot_dimension_numbers<[1], [0], [0], [1], [0, 0, 1, 1], [], []>} : vector<16x32xbf16>, vector<32x64xbf16>, vector<16x64xf32> -> vector<16x64xf32>
    %10 = arith.truncf %7 : vector<8x32xf32> to vector<8x32xbf16>
    %11 = vector.extract_strided_slice %9 {offsets = [0, 0], sizes = [16, 32], strides = [1, 1]} : vector<16x64xf32> to vector<16x32xf32>
    %12 = arith.truncf %11 : vector<16x32xf32> to vector<16x32xbf16>
    %13 = vector.extract_strided_slice %9 {offsets = [0, 32], sizes = [16, 32], strides = [1, 1]} : vector<16x64xf32> to vector<16x32xf32>
    %14 = arith.truncf %13 : vector<16x32xf32> to vector<16x32xbf16>
    %15 = vector.extract_strided_slice %10 {offsets = [0, 0], sizes = [8, 4], strides = [1, 1]} : vector<8x32xbf16> to vector<8x4xbf16>
    %16 = vector.extract_strided_slice %12 {offsets = [0, 0], sizes = [16, 4], strides = [1, 1]} : vector<16x32xbf16> to vector<16x4xbf16>
    %17 = vector.extract_strided_slice %14 {offsets = [0, 0], sizes = [16, 4], strides = [1, 1]} : vector<16x32xbf16> to vector<16x4xbf16>
    %cst_10 = arith.constant dense<0.000000e+00> : vector<8x16xf32>
    %18 = tpu.matmul %15, %16, %cst_10 {dimension_numbers = #tpu.dot_dimension_numbers<[1], [1], [0], [0], [0, 0, 1, 0], [], []>} : vector<8x4xbf16>, vector<16x4xbf16>, vector<8x16xf32> -> vector<8x16xf32>
    %cst_11 = arith.constant dense<0xFF800000> : vector<8xf32>
    %19 = vector.multi_reduction <maximumf>, %18, %cst_11 [1] : vector<8x16xf32> to vector<8xf32>
    %20 = vector.shape_cast %19 : vector<8xf32> to vector<8x1xf32>
    %21 = vector.broadcast %20 : vector<8x1xf32> to vector<8x16xf32>
    %22 = arith.subf %18, %21 : vector<8x16xf32>
    %23 = math.exp %22 : vector<8x16xf32>
    %cst_12 = arith.constant dense<0.000000e+00> : vector<8xf32>
    %24 = vector.multi_reduction <add>, %23, %cst_12 [1] : vector<8x16xf32> to vector<8xf32>
    %25 = vector.shape_cast %24 : vector<8xf32> to vector<8x1xf32>
    %26 = tpu.reciprocal %25 {approx = true} : vector<8x1xf32> -> vector<8x1xf32>
    %27 = vector.broadcast %26 : vector<8x1xf32> to vector<8x16xf32>
    %28 = arith.mulf %23, %27 : vector<8x16xf32>
    %29 = arith.truncf %28 : vector<8x16xf32> to vector<8x16xbf16>
    %cst_13 = arith.constant dense<0.000000e+00> : vector<8x4xf32>
    %30 = tpu.matmul %29, %17, %cst_13 {dimension_numbers = #tpu.dot_dimension_numbers<[1], [0], [0], [1], [0, 0, 1, 1], [], []>} : vector<8x16xbf16>, vector<16x4xbf16>, vector<8x4xf32> -> vector<8x4xf32>
    %31 = vector.extract_strided_slice %10 {offsets = [0, 4], sizes = [8, 4], strides = [1, 1]} : vector<8x32xbf16> to vector<8x4xbf16>
    %32 = vector.extract_strided_slice %12 {offsets = [0, 4], sizes = [16, 4], strides = [1, 1]} : vector<16x32xbf16> to vector<16x4xbf16>
    %33 = vector.extract_strided_slice %14 {offsets = [0, 4], sizes = [16, 4], strides = [1, 1]} : vector<16x32xbf16> to vector<16x4xbf16>
    %cst_14 = arith.constant dense<0.000000e+00> : vector<8x16xf32>
    %34 = tpu.matmul %31, %32, %cst_14 {dimension_numbers = #tpu.dot_dimension_numbers<[1], [1], [0], [0], [0, 0, 1, 0], [], []>} : vector<8x4xbf16>, vector<16x4xbf16>, vector<8x16xf32> -> vector<8x16xf32>
    %cst_15 = arith.constant dense<0xFF800000> : vector<8xf32>
    %35 = vector.multi_reduction <maximumf>, %34, %cst_15 [1] : vector<8x16xf32> to vector<8xf32>
    %36 = vector.shape_cast %35 : vector<8xf32> to vector<8x1xf32>
    %37 = vector.broadcast %36 : vector<8x1xf32> to vector<8x16xf32>
    %38 = arith.subf %34, %37 : vector<8x16xf32>
    %39 = math.exp %38 : vector<8x16xf32>
    %cst_16 = arith.constant dense<0.000000e+00> : vector<8xf32>
    %40 = vector.multi_reduction <add>, %39, %cst_16 [1] : vector<8x16xf32> to vector<8xf32>
    %41 = vector.shape_cast %40 : vector<8xf32> to vector<8x1xf32>
    %42 = tpu.reciprocal %41 {approx = true} : vector<8x1xf32> -> vector<8x1xf32>
    %43 = vector.broadcast %42 : vector<8x1xf32> to vector<8x16xf32>
    %44 = arith.mulf %39, %43 : vector<8x16xf32>
    %45 = arith.truncf %44 : vector<8x16xf32> to vector<8x16xbf16>
    %cst_17 = arith.constant dense<0.000000e+00> : vector<8x4xf32>
    %46 = tpu.matmul %45, %33, %cst_17 {dimension_numbers = #tpu.dot_dimension_numbers<[1], [0], [0], [1], [0, 0, 1, 1], [], []>} : vector<8x16xbf16>, vector<16x4xbf16>, vector<8x4xf32> -> vector<8x4xf32>
    %47 = vector.extract_strided_slice %10 {offsets = [0, 8], sizes = [8, 4], strides = [1, 1]} : vector<8x32xbf16> to vector<8x4xbf16>
    %48 = vector.extract_strided_slice %12 {offsets = [0, 8], sizes = [16, 4], strides = [1, 1]} : vector<16x32xbf16> to vector<16x4xbf16>
    %49 = vector.extract_strided_slice %14 {offsets = [0, 8], sizes = [16, 4], strides = [1, 1]} : vector<16x32xbf16> to vector<16x4xbf16>
    %cst_18 = arith.constant dense<0.000000e+00> : vector<8x16xf32>
    %50 = tpu.matmul %47, %48, %cst_18 {dimension_numbers = #tpu.dot_dimension_numbers<[1], [1], [0], [0], [0, 0, 1, 0], [], []>} : vector<8x4xbf16>, vector<16x4xbf16>, vector<8x16xf32> -> vector<8x16xf32>
    %cst_19 = arith.constant dense<0xFF800000> : vector<8xf32>
    %51 = vector.multi_reduction <maximumf>, %50, %cst_19 [1] : vector<8x16xf32> to vector<8xf32>
    %52 = vector.shape_cast %51 : vector<8xf32> to vector<8x1xf32>
    %53 = vector.broadcast %52 : vector<8x1xf32> to vector<8x16xf32>
    %54 = arith.subf %50, %53 : vector<8x16xf32>
    %55 = math.exp %54 : vector<8x16xf32>
    %cst_20 = arith.constant dense<0.000000e+00> : vector<8xf32>
    %56 = vector.multi_reduction <add>, %55, %cst_20 [1] : vector<8x16xf32> to vector<8xf32>
    %57 = vector.shape_cast %56 : vector<8xf32> to vector<8x1xf32>
    %58 = tpu.reciprocal %57 {approx = true} : vector<8x1xf32> -> vector<8x1xf32>
    %59 = vector.broadcast %58 : vector<8x1xf32> to vector<8x16xf32>
    %60 = arith.mulf %55, %59 : vector<8x16xf32>
    %61 = arith.truncf %60 : vector<8x16xf32> to vector<8x16xbf16>
    %cst_21 = arith.constant dense<0.000000e+00> : vector<8x4xf32>
    %62 = tpu.matmul %61, %49, %cst_21 {dimension_numbers = #tpu.dot_dimension_numbers<[1], [0], [0], [1], [0, 0, 1, 1], [], []>} : vector<8x16xbf16>, vector<16x4xbf16>, vector<8x4xf32> -> vector<8x4xf32>
    %63 = vector.extract_strided_slice %10 {offsets = [0, 12], sizes = [8, 4], strides = [1, 1]} : vector<8x32xbf16> to vector<8x4xbf16>
    %64 = vector.extract_strided_slice %12 {offsets = [0, 12], sizes = [16, 4], strides = [1, 1]} : vector<16x32xbf16> to vector<16x4xbf16>
    %65 = vector.extract_strided_slice %14 {offsets = [0, 12], sizes = [16, 4], strides = [1, 1]} : vector<16x32xbf16> to vector<16x4xbf16>
    %cst_22 = arith.constant dense<0.000000e+00> : vector<8x16xf32>
    %66 = tpu.matmul %63, %64, %cst_22 {dimension_numbers = #tpu.dot_dimension_numbers<[1], [1], [0], [0], [0, 0, 1, 0], [], []>} : vector<8x4xbf16>, vector<16x4xbf16>, vector<8x16xf32> -> vector<8x16xf32>
    %cst_23 = arith.constant dense<0xFF800000> : vector<8xf32>
    %67 = vector.multi_reduction <maximumf>, %66, %cst_23 [1] : vector<8x16xf32> to vector<8xf32>
    %68 = vector.shape_cast %67 : vector<8xf32> to vector<8x1xf32>
    %69 = vector.broadcast %68 : vector<8x1xf32> to vector<8x16xf32>
    %70 = arith.subf %66, %69 : vector<8x16xf32>
    %71 = math.exp %70 : vector<8x16xf32>
    %cst_24 = arith.constant dense<0.000000e+00> : vector<8xf32>
    %72 = vector.multi_reduction <add>, %71, %cst_24 [1] : vector<8x16xf32> to vector<8xf32>
    %73 = vector.shape_cast %72 : vector<8xf32> to vector<8x1xf32>
    %74 = tpu.reciprocal %73 {approx = true} : vector<8x1xf32> -> vector<8x1xf32>
    %75 = vector.broadcast %74 : vector<8x1xf32> to vector<8x16xf32>
    %76 = arith.mulf %71, %75 : vector<8x16xf32>
    %77 = arith.truncf %76 : vector<8x16xf32> to vector<8x16xbf16>
    %cst_25 = arith.constant dense<0.000000e+00> : vector<8x4xf32>
    %78 = tpu.matmul %77, %65, %cst_25 {dimension_numbers = #tpu.dot_dimension_numbers<[1], [0], [0], [1], [0, 0, 1, 1], [], []>} : vector<8x16xbf16>, vector<16x4xbf16>, vector<8x4xf32> -> vector<8x4xf32>
    %79 = vector.extract_strided_slice %10 {offsets = [0, 16], sizes = [8, 4], strides = [1, 1]} : vector<8x32xbf16> to vector<8x4xbf16>
    %80 = vector.extract_strided_slice %12 {offsets = [0, 16], sizes = [16, 4], strides = [1, 1]} : vector<16x32xbf16> to vector<16x4xbf16>
    %81 = vector.extract_strided_slice %14 {offsets = [0, 16], sizes = [16, 4], strides = [1, 1]} : vector<16x32xbf16> to vector<16x4xbf16>
    %cst_26 = arith.constant dense<0.000000e+00> : vector<8x16xf32>
    %82 = tpu.matmul %79, %80, %cst_26 {dimension_numbers = #tpu.dot_dimension_numbers<[1], [1], [0], [0], [0, 0, 1, 0], [], []>} : vector<8x4xbf16>, vector<16x4xbf16>, vector<8x16xf32> -> vector<8x16xf32>
    %cst_27 = arith.constant dense<0xFF800000> : vector<8xf32>
    %83 = vector.multi_reduction <maximumf>, %82, %cst_27 [1] : vector<8x16xf32> to vector<8xf32>
    %84 = vector.shape_cast %83 : vector<8xf32> to vector<8x1xf32>
    %85 = vector.broadcast %84 : vector<8x1xf32> to vector<8x16xf32>
    %86 = arith.subf %82, %85 : vector<8x16xf32>
    %87 = math.exp %86 : vector<8x16xf32>
    %cst_28 = arith.constant dense<0.000000e+00> : vector<8xf32>
    %88 = vector.multi_reduction <add>, %87, %cst_28 [1] : vector<8x16xf32> to vector<8xf32>
    %89 = vector.shape_cast %88 : vector<8xf32> to vector<8x1xf32>
    %90 = tpu.reciprocal %89 {approx = true} : vector<8x1xf32> -> vector<8x1xf32>
    %91 = vector.broadcast %90 : vector<8x1xf32> to vector<8x16xf32>
    %92 = arith.mulf %87, %91 : vector<8x16xf32>
    %93 = arith.truncf %92 : vector<8x16xf32> to vector<8x16xbf16>
    %cst_29 = arith.constant dense<0.000000e+00> : vector<8x4xf32>
    %94 = tpu.matmul %93, %81, %cst_29 {dimension_numbers = #tpu.dot_dimension_numbers<[1], [0], [0], [1], [0, 0, 1, 1], [], []>} : vector<8x16xbf16>, vector<16x4xbf16>, vector<8x4xf32> -> vector<8x4xf32>
    %95 = vector.extract_strided_slice %10 {offsets = [0, 20], sizes = [8, 4], strides = [1, 1]} : vector<8x32xbf16> to vector<8x4xbf16>
    %96 = vector.extract_strided_slice %12 {offsets = [0, 20], sizes = [16, 4], strides = [1, 1]} : vector<16x32xbf16> to vector<16x4xbf16>
    %97 = vector.extract_strided_slice %14 {offsets = [0, 20], sizes = [16, 4], strides = [1, 1]} : vector<16x32xbf16> to vector<16x4xbf16>
    %cst_30 = arith.constant dense<0.000000e+00> : vector<8x16xf32>
    %98 = tpu.matmul %95, %96, %cst_30 {dimension_numbers = #tpu.dot_dimension_numbers<[1], [1], [0], [0], [0, 0, 1, 0], [], []>} : vector<8x4xbf16>, vector<16x4xbf16>, vector<8x16xf32> -> vector<8x16xf32>
    %cst_31 = arith.constant dense<0xFF800000> : vector<8xf32>
    %99 = vector.multi_reduction <maximumf>, %98, %cst_31 [1] : vector<8x16xf32> to vector<8xf32>
    %100 = vector.shape_cast %99 : vector<8xf32> to vector<8x1xf32>
    %101 = vector.broadcast %100 : vector<8x1xf32> to vector<8x16xf32>
    %102 = arith.subf %98, %101 : vector<8x16xf32>
    %103 = math.exp %102 : vector<8x16xf32>
    %cst_32 = arith.constant dense<0.000000e+00> : vector<8xf32>
    %104 = vector.multi_reduction <add>, %103, %cst_32 [1] : vector<8x16xf32> to vector<8xf32>
    %105 = vector.shape_cast %104 : vector<8xf32> to vector<8x1xf32>
    %106 = tpu.reciprocal %105 {approx = true} : vector<8x1xf32> -> vector<8x1xf32>
    %107 = vector.broadcast %106 : vector<8x1xf32> to vector<8x16xf32>
    %108 = arith.mulf %103, %107 : vector<8x16xf32>
    %109 = arith.truncf %108 : vector<8x16xf32> to vector<8x16xbf16>
    %cst_33 = arith.constant dense<0.000000e+00> : vector<8x4xf32>
    %110 = tpu.matmul %109, %97, %cst_33 {dimension_numbers = #tpu.dot_dimension_numbers<[1], [0], [0], [1], [0, 0, 1, 1], [], []>} : vector<8x16xbf16>, vector<16x4xbf16>, vector<8x4xf32> -> vector<8x4xf32>
    %111 = vector.extract_strided_slice %10 {offsets = [0, 24], sizes = [8, 4], strides = [1, 1]} : vector<8x32xbf16> to vector<8x4xbf16>
    %112 = vector.extract_strided_slice %12 {offsets = [0, 24], sizes = [16, 4], strides = [1, 1]} : vector<16x32xbf16> to vector<16x4xbf16>
    %113 = vector.extract_strided_slice %14 {offsets = [0, 24], sizes = [16, 4], strides = [1, 1]} : vector<16x32xbf16> to vector<16x4xbf16>
    %cst_34 = arith.constant dense<0.000000e+00> : vector<8x16xf32>
    %114 = tpu.matmul %111, %112, %cst_34 {dimension_numbers = #tpu.dot_dimension_numbers<[1], [1], [0], [0], [0, 0, 1, 0], [], []>} : vector<8x4xbf16>, vector<16x4xbf16>, vector<8x16xf32> -> vector<8x16xf32>
    %cst_35 = arith.constant dense<0xFF800000> : vector<8xf32>
    %115 = vector.multi_reduction <maximumf>, %114, %cst_35 [1] : vector<8x16xf32> to vector<8xf32>
    %116 = vector.shape_cast %115 : vector<8xf32> to vector<8x1xf32>
    %117 = vector.broadcast %116 : vector<8x1xf32> to vector<8x16xf32>
    %118 = arith.subf %114, %117 : vector<8x16xf32>
    %119 = math.exp %118 : vector<8x16xf32>
    %cst_36 = arith.constant dense<0.000000e+00> : vector<8xf32>
    %120 = vector.multi_reduction <add>, %119, %cst_36 [1] : vector<8x16xf32> to vector<8xf32>
    %121 = vector.shape_cast %120 : vector<8xf32> to vector<8x1xf32>
    %122 = tpu.reciprocal %121 {approx = true} : vector<8x1xf32> -> vector<8x1xf32>
    %123 = vector.broadcast %122 : vector<8x1xf32> to vector<8x16xf32>
    %124 = arith.mulf %119, %123 : vector<8x16xf32>
    %125 = arith.truncf %124 : vector<8x16xf32> to vector<8x16xbf16>
    %cst_37 = arith.constant dense<0.000000e+00> : vector<8x4xf32>
    %126 = tpu.matmul %125, %113, %cst_37 {dimension_numbers = #tpu.dot_dimension_numbers<[1], [0], [0], [1], [0, 0, 1, 1], [], []>} : vector<8x16xbf16>, vector<16x4xbf16>, vector<8x4xf32> -> vector<8x4xf32>
    %127 = vector.extract_strided_slice %10 {offsets = [0, 28], sizes = [8, 4], strides = [1, 1]} : vector<8x32xbf16> to vector<8x4xbf16>
    %128 = vector.extract_strided_slice %12 {offsets = [0, 28], sizes = [16, 4], strides = [1, 1]} : vector<16x32xbf16> to vector<16x4xbf16>
    %129 = vector.extract_strided_slice %14 {offsets = [0, 28], sizes = [16, 4], strides = [1, 1]} : vector<16x32xbf16> to vector<16x4xbf16>
    %cst_38 = arith.constant dense<0.000000e+00> : vector<8x16xf32>
    %130 = tpu.matmul %127, %128, %cst_38 {dimension_numbers = #tpu.dot_dimension_numbers<[1], [1], [0], [0], [0, 0, 1, 0], [], []>} : vector<8x4xbf16>, vector<16x4xbf16>, vector<8x16xf32> -> vector<8x16xf32>
    %cst_39 = arith.constant dense<0xFF800000> : vector<8xf32>
    %131 = vector.multi_reduction <maximumf>, %130, %cst_39 [1] : vector<8x16xf32> to vector<8xf32>
    %132 = vector.shape_cast %131 : vector<8xf32> to vector<8x1xf32>
    %133 = vector.broadcast %132 : vector<8x1xf32> to vector<8x16xf32>
    %134 = arith.subf %130, %133 : vector<8x16xf32>
    %135 = math.exp %134 : vector<8x16xf32>
    %cst_40 = arith.constant dense<0.000000e+00> : vector<8xf32>
    %136 = vector.multi_reduction <add>, %135, %cst_40 [1] : vector<8x16xf32> to vector<8xf32>
    %137 = vector.shape_cast %136 : vector<8xf32> to vector<8x1xf32>
    %138 = tpu.reciprocal %137 {approx = true} : vector<8x1xf32> -> vector<8x1xf32>
    %139 = vector.broadcast %138 : vector<8x1xf32> to vector<8x16xf32>
    %140 = arith.mulf %135, %139 : vector<8x16xf32>
    %141 = arith.truncf %140 : vector<8x16xf32> to vector<8x16xbf16>
    %cst_41 = arith.constant dense<0.000000e+00> : vector<8x4xf32>
    %142 = tpu.matmul %141, %129, %cst_41 {dimension_numbers = #tpu.dot_dimension_numbers<[1], [0], [0], [1], [0, 0, 1, 1], [], []>} : vector<8x16xbf16>, vector<16x4xbf16>, vector<8x4xf32> -> vector<8x4xf32>
    %143 = tpu.concatenate %30, %46, %62, %78, %94, %110, %126, %142 in 1 : vector<8x4xf32>, vector<8x4xf32>, vector<8x4xf32>, vector<8x4xf32>, vector<8x4xf32>, vector<8x4xf32>, vector<8x4xf32>, vector<8x4xf32> -> vector<8x32xf32>
    %144 = arith.truncf %143 : vector<8x32xf32> to vector<8x32xbf16>
    %c0_42 = arith.constant 0 : index
    %c0_43 = arith.constant 0 : index
    %145 = vector.load %arg5[%c0_42, %c0_43] : memref<32x32xbf16, #tpu.memory_space<vmem>>, vector<32x32xbf16>
    %cst_44 = arith.constant dense<0.000000e+00> : vector<8x32xf32>
    %146 = tpu.matmul %144, %145, %cst_44 {dimension_numbers = #tpu.dot_dimension_numbers<[1], [0], [0], [1], [0, 0, 1, 1], [], []>} : vector<8x32xbf16>, vector<32x32xbf16>, vector<8x32xf32> -> vector<8x32xf32>
    %c0_45 = arith.constant 0 : index
    %c0_46 = arith.constant 0 : index
    %147 = vector.load %arg6[%c0_45, %c0_46] : memref<1x32xf32, #tpu.memory_space<vmem>>, vector<1x32xf32>
    %148 = vector.broadcast %147 : vector<1x32xf32> to vector<8x32xf32>
    %149 = arith.addf %146, %148 : vector<8x32xf32>
    %c0_47 = arith.constant 0 : index
    %c0_48 = arith.constant 0 : index
    %c0_49 = arith.constant 0 : index
    %150 = vector.load %arg7[%c0_47, %c0_48, %c0_49] : memref<1x8x32xf32, #tpu.memory_space<vmem>>, vector<1x8x32xf32>
    %151 = vector.shape_cast %150 : vector<1x8x32xf32> to vector<8x32xf32>
    %152 = vector.shape_cast %149 : vector<8x32xf32> to vector<1x8x32xf32>
    tpu.vector_store %arg7[%c0_47, %c0_48, %c0_49], %152 {strides = array<i32>} : memref<1x8x32xf32, #tpu.memory_space<vmem>>, vector<1x8x32xf32>,
    return
  }
  func.func @transform_0(%arg0: i32) -> (i32, i32, i32) {
    %c0_i32 = arith.constant 0 : i32
    %c0_i32_0 = arith.constant 0 : i32
    %c0_i32_1 = arith.constant 0 : i32
    return %arg0, %c0_i32, %c0_i32_0 : i32, i32, i32
  }
  func.func @transform_1(%arg0: i32) -> (i32, i32, i32) {
    %c0_i32 = arith.constant 0 : i32
    %c0_i32_0 = arith.constant 0 : i32
    %c0_i32_1 = arith.constant 0 : i32
    return %arg0, %c0_i32, %c0_i32_0 : i32, i32, i32
  }
  func.func @transform_2(%arg0: i32) -> (i32, i32) {
    %c0_i32 = arith.constant 0 : i32
    %c0_i32_0 = arith.constant 0 : i32
    %c0_i32_1 = arith.constant 0 : i32
    return %c0_i32, %c0_i32_0 : i32, i32
  }
  func.func @transform_3(%arg0: i32) -> (i32, i32) {
    %c0_i32 = arith.constant 0 : i32
    %c0_i32_0 = arith.constant 0 : i32
    %c0_i32_1 = arith.constant 0 : i32
    return %c0_i32, %c0_i32_0 : i32, i32
  }
  func.func @transform_4(%arg0: i32) -> (i32, i32) {
    %c0_i32 = arith.constant 0 : i32
    %c0_i32_0 = arith.constant 0 : i32
    %c0_i32_1 = arith.constant 0 : i32
    return %c0_i32, %c0_i32_0 : i32, i32
  }
  func.func @transform_5(%arg0: i32) -> (i32, i32) {
    %c0_i32 = arith.constant 0 : i32
    %c0_i32_0 = arith.constant 0 : i32
    %c0_i32_1 = arith.constant 0 : i32
    return %c0_i32, %c0_i32_0 : i32, i32
  }
  func.func @transform_6(%arg0: i32) -> (i32, i32, i32) {
    %c0_i32 = arith.constant 0 : i32
    %c0_i32_0 = arith.constant 0 : i32
    %c0_i32_1 = arith.constant 0 : i32
    return %arg0, %c0_i32, %c0_i32_0 : i32, i32, i32
  }
}

</mosaic_0001>

<llo_original>
// kernel: attention_cross.1
$region0: #{attention_cross.1}
  #allocation0 [shape = 'u32[]', space=smem, size = 0x4, offset = 0x4, fixed_abs, tag = 'smem constant byte address 0x4 - core index']
  #allocation1 [shape = 'u32[144,128]{1,0:T(1,128)}', space=vmem, size = 0x12000, scoped, tag = 'internal scratch']
  %s0 = inlined_call_operand.vmem [shape: f32[2,8,32], index: 0, kind: input, shape index: {}]
  %s1 = inlined_call_operand.vmem [shape: f32[2,16,32], index: 1, kind: input, shape index: {}]
  %s2 = inlined_call_operand.vmem [shape: bf16[32,32], index: 2, kind: input, shape index: {}]
  %s3 = inlined_call_operand.vmem [shape: bf16[32,64], index: 3, kind: input, shape index: {}]
  %s4 = inlined_call_operand.vmem [shape: bf16[32,32], index: 4, kind: input, shape index: {}]
  %s5 = inlined_call_operand.vmem [shape: f32[1,32], index: 5, kind: input, shape index: {}]
  %s6 = inlined_call_operand.hbm [shape: f32[2,8,32], index: 6, kind: output, shape index: {}]
  %s7 = sld [smem:[#allocation0]]
  $region57: #{attention_cross.1} parent=0
    _
  %s9 = ssub.s32 1, %s7
  %s10 = scalar_select 0, %s9, %s7
  $region1: #{attention_cross.1} parent=0
    #allocation2 [shape = 'u8[8192]{0}', space=vmem, size = 0x2000, scoped, tag = 'output window, operand 0']
    #allocation3 [shape = 's32[2]{0}', space=sflag, size = 0x8, scoped, tag = 'scoped memory for attention_cross.1']
    %11 = vsyncpa [#allocation3], 0
    %s12 = scalar_lea.sflag [#allocation3], 1
    %13 = vsyncpa %s12, 0
    loop: start=0, step=1, limit=4
    $region2: #{attention_cross.1} parent=1 // loop_pre_header
      _
    $region3: #{attention_cross.1} parent=1 // loop_header
      %s15 = sphi 0, %s19
      %p16 = scmp.ge.s32.totalorder %s15, 4
      %s25 = sphi 0, %s27
      %s28 = sphi 0, %s25
      %s29 = sphi 0, %s28
      %s45 = sphi 0, %s29
      %s51 = sphi 0, %s53
      %s54 = sphi 0, %s51
      %s55 = sphi 0, %s54
      %s71 = sphi 0, %s55
      %s75 = sphi 0, %s75
      %s77 = sphi 0, %s75
      %s78 = sphi 0, %s77
      %s92 = sphi 0, %s78
      %s96 = sphi 0, %s96
      %s98 = sphi 0, %s96
      %s99 = sphi 0, %s98
      %s113 = sphi 0, %s99
      %s117 = sphi 0, %s117
      %s119 = sphi 0, %s117
      %s120 = sphi 0, %s119
      %s134 = sphi 0, %s120
      %s138 = sphi 0, %s138
      %s140 = sphi 0, %s138
      %s141 = sphi 0, %s140
      %s155 = sphi 0, %s141
      %s161 = sphi 0, %s163
      %s164 = sphi 0, %s161
      %s165 = sphi 0, %s164
      %s181 = sphi 0, %s165
    $region4: #{attention_cross.1} parent=1 // loop_header_branch
      %18 = sbr.rel (%p16) target = $region8
    $region5: #{attention_cross.1} parent=1 // loop_body
      %s20 = ssub.s32 %s15, 1
      %s21 = ssub.s32 %s15, 2
      %s22 = sadd.s32 %s15, 1
      %s23 = ssub.s32 %s15, %s22
      %p24 = scmp.eq.s32.totalorder %s23, 0
      %s26 = sadd.s32 %s25, 1
      %s27 = scalar_select %p24, %s25, %s26
      %p30 = pneg %p24
      %p31 = scmp.eq.s32.totalorder %s15, 1
      %p32 = por %p30, %p31
      %p33 = scmp.ne.s32.totalorder %s25, %s28
      %p34 = scmp.eq.s32.totalorder %s15, 0
      %p35 = por %p33, %p34
      %p36 = scmp.ne.s32.totalorder %s25, %s28
      %p37 = scmp.eq.s32.totalorder %s20, 1
      %p38 = por %p36, %p37
      %p39 = scmp.ne.s32.totalorder %s28, %s29
      %p40 = scmp.eq.s32.totalorder %s20, 0
      %p41 = por %p39, %p40
      %p42 = scmp.ne.s32.totalorder %s28, %s29
      %p43 = scmp.eq.s32.totalorder %s21, 1
      %p44 = por %p42, %p43
      %p46 = scmp.ne.s32.totalorder %s29, %s45
      %p47 = scmp.eq.s32.totalorder %s21, 0
      %p48 = por %p46, %p47
      %s49 = ssub.s32 %s15, %s22
      %p50 = scmp.eq.s32.totalorder %s49, 0
      %s52 = sadd.s32 %s51, 1
      %s53 = scalar_select %p50, %s51, %s52
      %p56 = pneg %p50
      %p57 = scmp.eq.s32.totalorder %s15, 1
      %p58 = por %p56, %p57
      %p59 = scmp.ne.s32.totalorder %s51, %s54
      %p60 = scmp.eq.s32.totalorder %s15, 0
      %p61 = por %p59, %p60
      %p62 = scmp.ne.s32.totalorder %s51, %s54
      %p63 = scmp.eq.s32.totalorder %s20, 1
      %p64 = por %p62, %p63
      %p65 = scmp.ne.s32.totalorder %s54, %s55
      %p66 = scmp.eq.s32.totalorder %s20, 0
      %p67 = por %p65, %p66
      %p68 = scmp.ne.s32.totalorder %s54, %s55
      %p69 = scmp.eq.s32.totalorder %s21, 1
      %p70 = por %p68, %p69
      %p72 = scmp.ne.s32.totalorder %s55, %s71
      %p73 = scmp.eq.s32.totalorder %s21, 0
      %p74 = por %p72, %p73
      %s76 = sadd.s32 %s75, 1
      %p79 = scmp.eq.s32.totalorder %s15, 1
      %p80 = scmp.ne.s32.totalorder %s75, %s77
      %p81 = scmp.eq.s32.totalorder %s15, 0
      %p82 = por %p80, %p81
      %p83 = scmp.ne.s32.totalorder %s75, %s77
      %p84 = scmp.eq.s32.totalorder %s20, 1
      %p85 = por %p83, %p84
      %p86 = scmp.ne.s32.totalorder %s77, %s78
      %p87 = scmp.eq.s32.totalorder %s20, 0
      %p88 = por %p86, %p87
      %p89 = scmp.ne.s32.totalorder %s77, %s78
      %p90 = scmp.eq.s32.totalorder %s21, 1
      %p91 = por %p89, %p90
      %p93 = scmp.ne.s32.totalorder %s78, %s92
      %p94 = scmp.eq.s32.totalorder %s21, 0
      %p95 = por %p93, %p94
      %s97 = sadd.s32 %s96, 1
      %p100 = scmp.eq.s32.totalorder %s15, 1
      %p101 = scmp.ne.s32.totalorder %s96, %s98
      %p102 = scmp.eq.s32.totalorder %s15, 0
      %p103 = por %p101, %p102
      %p104 = scmp.ne.s32.totalorder %s96, %s98
      %p105 = scmp.eq.s32.totalorder %s20, 1
      %p106 = por %p104, %p105
      %p107 = scmp.ne.s32.totalorder %s98, %s99
      %p108 = scmp.eq.s32.totalorder %s20, 0
      %p109 = por %p107, %p108
      %p110 = scmp.ne.s32.totalorder %s98, %s99
      %p111 = scmp.eq.s32.totalorder %s21, 1
      %p112 = por %p110, %p111
      %p114 = scmp.ne.s32.totalorder %s99, %s113
      %p115 = scmp.eq.s32.totalorder %s21, 0
      %p116 = por %p114, %p115
      %s118 = sadd.s32 %s117, 1
      %p121 = scmp.eq.s32.totalorder %s15, 1
      %p122 = scmp.ne.s32.totalorder %s117, %s119
      %p123 = scmp.eq.s32.totalorder %s15, 0
      %p124 = por %p122, %p123
      %p125 = scmp.ne.s32.totalorder %s117, %s119
      %p126 = scmp.eq.s32.totalorder %s20, 1
      %p127 = por %p125, %p126
      %p128 = scmp.ne.s32.totalorder %s119, %s120
      %p129 = scmp.eq.s32.totalorder %s20, 0
      %p130 = por %p128, %p129
      %p131 = scmp.ne.s32.totalorder %s119, %s120
      %p132 = scmp.eq.s32.totalorder %s21, 1
      %p133 = por %p131, %p132
      %p135 = scmp.ne.s32.totalorder %s120, %s134
      %p136 = scmp.eq.s32.totalorder %s21, 0
      %p137 = por %p135, %p136
      %s139 = sadd.s32 %s138, 1
      %p142 = scmp.eq.s32.totalorder %s15, 1
      %p143 = scmp.ne.s32.totalorder %s138, %s140
      %p144 = scmp.eq.s32.totalorder %s15, 0
      %p145 = por %p143, %p144
      %p146 = scmp.ne.s32.totalorder %s138, %s140
      %p147 = scmp.eq.s32.totalorder %s20, 1
      %p148 = por %p146, %p147
      %p149 = scmp.ne.s32.totalorder %s140, %s141
      %p150 = scmp.eq.s32.totalorder %s20, 0
      %p151 = por %p149, %p150
      %p152 = scmp.ne.s32.totalorder %s140, %s141
      %p153 = scmp.eq.s32.totalorder %s21, 1
      %p154 = por %p152, %p153
      %p156 = scmp.ne.s32.totalorder %s141, %s155
      %p157 = scmp.eq.s32.totalorder %s21, 0
      %p158 = por %p156, %p157
      %s159 = ssub.s32 %s15, %s22
      %p160 = scmp.eq.s32.totalorder %s159, 0
      %s162 = sadd.s32 %s161, 1
      %s163 = scalar_select %p160, %s161, %s162
      %p166 = pneg %p160
      %p167 = scmp.eq.s32.totalorder %s15, 1
      %p168 = por %p166, %p167
      %p169 = scmp.ne.s32.totalorder %s161, %s164
      %p170 = scmp.eq.s32.totalorder %s15, 0
      %p171 = por %p169, %p170
      %p172 = scmp.ne.s32.totalorder %s161, %s164
      %p173 = scmp.eq.s32.totalorder %s20, 1
      %p174 = por %p172, %p173
      %p175 = scmp.ne.s32.totalorder %s164, %s165
      %p176 = scmp.eq.s32.totalorder %s20, 0
      %p177 = por %p175, %p176
      %p178 = scmp.ne.s32.totalorder %s164, %s165
      %p179 = scmp.eq.s32.totalorder %s21, 1
      %p180 = por %p178, %p179
      %p182 = scmp.ne.s32.totalorder %s165, %s181
      %p183 = scmp.eq.s32.totalorder %s21, 0
      %p184 = por %p182, %p183
      %p185 = scmp.le.s32.totalorder 1, %s15
      %p186 = scmp.lt.s32.totalorder %s15, 3
      %p187 = pnand %p185, %p186
      %p188 = pneg %p187
      // Predicated region
      $region9: #{attention_cross.1} parent=5 // pred_check
        _
      $region10: #{attention_cross.1} parent=5 // pred_check_branch
        %190 = sbr.rel (%p187) target = $region12
      $region11: #{attention_cross.1} parent=5 // pred_region
        %s191 = ssub.s32 %s15, 1
        // Predicated region
        $region13: #{attention_cross.1} parent=11 // pred_check
          %p192 = pneg %p88
        $region14: #{attention_cross.1} parent=11 // pred_check_branch
          %194 = sbr.rel (%p192) target = $region16
        $region15: #{attention_cross.1} parent=11 // pred_region
          _
        $region16: #{attention_cross.1} parent=11 // pred_fallthru
          _
        // Predicated region
        $region17: #{attention_cross.1} parent=11 // pred_check
          %p195 = pneg %p109
        $region18: #{attention_cross.1} parent=11 // pred_check_branch
          %197 = sbr.rel (%p195) target = $region20
        $region19: #{attention_cross.1} parent=11 // pred_region
          _
        $region20: #{attention_cross.1} parent=11 // pred_fallthru
          _
        // Predicated region
        $region21: #{attention_cross.1} parent=11 // pred_check
          %p198 = pneg %p130
        $region22: #{attention_cross.1} parent=11 // pred_check_branch
          %200 = sbr.rel (%p198) target = $region24
        $region23: #{attention_cross.1} parent=11 // pred_region
          _
        $region24: #{attention_cross.1} parent=11 // pred_fallthru
          _
        // Predicated region
        $region25: #{attention_cross.1} parent=11 // pred_check
          %p201 = pneg %p151
        $region26: #{attention_cross.1} parent=11 // pred_check_branch
          %203 = sbr.rel (%p201) target = $region28
        $region27: #{attention_cross.1} parent=11 // pred_region
          _
        $region28: #{attention_cross.1} parent=11 // pred_fallthru
          _
      $region12: #{attention_cross.1} parent=5 // pred_fallthru
        _
      %p204 = scmp.lt.s32.totalorder %s15, 2
      // Predicated region
      $region29: #{attention_cross.1} parent=5 // pred_check
        %p205 = pneg %p204
      $region30: #{attention_cross.1} parent=5 // pred_check_branch
        %207 = sbr.rel (%p205) target = $region32
      $region31: #{attention_cross.1} parent=5 // pred_region
        // Predicated region
        $region33: #{attention_cross.1} parent=31 // pred_check
          %p208 = pneg %p35
        $region34: #{attention_cross.1} parent=31 // pred_check_branch
          %210 = sbr.rel (%p208) target = $region36
        $region35: #{attention_cross.1} parent=31 // pred_region
          %p211 = scmp.lt.s32.totalorder %s15, 1
          %s212 = scalar_select %p211, %s15, 1
          %s213 = smul.addr %s212, 8
          %s214 = scalar_lea.vmem %s0, %s213
        $region36: #{attention_cross.1} parent=31 // pred_fallthru
          _
        // Predicated region
        $region37: #{attention_cross.1} parent=31 // pred_check
          %p215 = pneg %p61
        $region38: #{attention_cross.1} parent=31 // pred_check_branch
          %217 = sbr.rel (%p215) target = $region40
        $region39: #{attention_cross.1} parent=31 // pred_region
          %p218 = scmp.lt.s32.totalorder %s15, 1
          %s219 = scalar_select %p218, %s15, 1
          %s220 = smul.addr %s219, 2
          %s221 = smul.addr %s220, 8
          %s222 = scalar_lea.vmem %s1, %s221
        $region40: #{attention_cross.1} parent=31 // pred_fallthru
          _
      $region32: #{attention_cross.1} parent=5 // pred_fallthru
        _
      %p223 = scmp.le.s32.totalorder 1, %s15
      %p224 = scmp.lt.s32.totalorder %s15, 3
      %p225 = pnand %p223, %p224
      %p226 = pneg %p225
      // Predicated region
      $region41: #{attention_cross.1} parent=5 // pred_check
        _
      $region42: #{attention_cross.1} parent=5 // pred_check_branch
        %228 = sbr.rel (%p225) target = $region44
      $region43: #{attention_cross.1} parent=5 // pred_region
        %s229 = ssub.s32 %s15, 1
        %p230 = scmp.lt.s32.totalorder %s20, 1
        %s231 = scalar_select %p230, %s20, 1
        %s232 = smul.addr %s231, 8
        %s233 = scalar_lea.vmem %s0, %s232
        %p234 = pneg %p41
        %p235 = pneg %p38
        %p236 = scmp.lt.s32.totalorder %s20, 1
        %s237 = scalar_select %p236, %s20, 1
        %s238 = smul.addr %s237, 2
        %s239 = smul.addr %s238, 8
        %s240 = scalar_lea.vmem %s1, %s239
        %p241 = pneg %p67
        %p242 = pneg %p64
        %p243 = pneg %p88
        %p244 = pneg %p85
        %p245 = pneg %p109
        %p246 = pneg %p106
        %p247 = pneg %p130
        %p248 = pneg %p127
        %p249 = pneg %p151
        %p250 = pneg %p148
        %p251 = pneg %p177
        %p252 = pneg %p174
        %s253 = sand.u32 %s164, 1
        %s254 = scalar_lea.sflag [#allocation3], %s253
        %s255 = sand.u32 %s164, 1
        %s256 = smul.addr %s255, 8
        %s257 = scalar_lea.vmem [#allocation2], %s256
        %p258 = scmp.lt.s32.totalorder %s20, 1
        %s259 = scalar_select %p258, %s20, 1
        %s260 = smul.addr %s259, 8
        %s261 = scalar_lea.vmem %s0, %s260
        %p262 = scmp.lt.s32.totalorder %s20, 1
        %s263 = scalar_select %p262, %s20, 1
        %s264 = smul.addr %s263, 2
        %s265 = smul.addr %s264, 8
        %s266 = scalar_lea.vmem %s1, %s265
        %v268 = vld [vmem:[%s261] sm:$0xff]
        %v269 = vpack.c.bf16 %v268, %v268
        %v270 = vld [vmem:[%s266] sm:$0xff]
        %v271 = vld [vmem:[%s266 + $0x8] sm:$0xff]
        %v272 = vpack.c.bf16 %v271, %v270
        %v273 = vld [vmem:[%s2] sm:$0xf]
        %v274 = vld [vmem:[%s2 + $0x4] sm:$0xf]
        %v275 = vld [vmem:[%s2 + $0x8] sm:$0xf]
        %v276 = vld [vmem:[%s2 + $0xc] sm:$0xf]
        %v281 = vunpack.c.l.b16 %v273
        %v282 = vunpack.c.l.b16 %v274
        %v283 = vunpack.c.l.b16 %v275
        %v284 = vunpack.c.l.b16 %v276
        %v285 = vpack.c.b16 %v282, %v281
        %v286 = vpack.c.b16 %v284, %v283
        %vm289 = vcmask 261120
        %v291 = vsel %vm289, %v269, 0
        %293 = vmatprep.subr.bf16.mxu0 0
        %294 = vmatpush1.bf16.msra.mxu0 %v285
        %295 = vmatprep.subr.bf16.mxu0 0
        %296 = vmatpush1.bf16.msra.mxu0 %v286
        %297 = vmatprep.subr.bf16.mxu0 0
        %298 = vmatpush1.bf16.msra.mxu0 0
        %299 = vmatprep.subr.bf16.mxu0 0
        %300 = vmatpush1.bf16.msra.mxu0 0
        %301 = vmatprep.subr.bf16.mxu0 0
        %302 = vmatpush1.bf16.msra.mxu0 0
        %303 = vmatprep.subr.bf16.mxu0 0
        %304 = vmatpush1.bf16.msra.mxu0 0
        %305 = vmatprep.subr.bf16.mxu0 0
        %306 = vmatpush1.bf16.msra.mxu0 0
        %307 = vmatprep.subr.bf16.mxu0 0
        %308 = vmatpush1.bf16.msra.mxu0 0
        %309 = vmatprep.subr.bf16.mxu0 0
        %310 = vmatpush1.bf16.msra.mxu0 0
        %311 = vmatprep.subr.bf16.mxu0 0
        %312 = vmatpush1.bf16.msra.mxu0 0
        %313 = vmatprep.subr.bf16.mxu0 0
        %314 = vmatpush1.bf16.msra.mxu0 0
        %315 = vmatprep.subr.bf16.mxu0 0
        %316 = vmatpush1.bf16.msra.mxu0 0
        %317 = vmatprep.subr.bf16.mxu0 0
        %318 = vmatpush1.bf16.msra.mxu0 0
        %319 = vmatprep.subr.bf16.mxu0 0
        %320 = vmatpush1.bf16.msra.mxu0 0
        %321 = vmatprep.subr.bf16.mxu0 0
        %322 = vmatpush1.bf16.msra.mxu0 0
        %323 = vmatprep.subr.bf16.mxu0 0
        %324 = vmatpush1.bf16.msra.mxu0 0
        %325 = vmatprep.mubr.bf16.mxu0 0
        %326 = vmatmul.mubr.bf16.gmra.mrb[0].mxu0 %v291
        %v327 = vpop.f32.mrb[0].mxu0
        %v328 = vadd.f32 0.0, %v327
        %v329 = vpop.f32.mrb[0].mxu0
        %v330 = vpop.f32.mrb[0].mxu0
        %v331 = vpop.f32.mrb[0].mxu0
        %332 = vdwg.mxu0
        %v333 = vld [vmem:[%s3] sm:$0xf]
        %v334 = vld [vmem:[%s3 + $0x4] sm:$0xf]
        %v335 = vld [vmem:[%s3 + $0x8] sm:$0xf]
        %v336 = vld [vmem:[%s3 + $0xc] sm:$0xf]
        %v341 = vunpack.c.l.b16 %v333
        %v342 = vunpack.c.l.b16 %v334
        %v343 = vunpack.c.l.b16 %v335
        %v344 = vunpack.c.l.b16 %v336
        %v345 = vpack.c.b16 %v342, %v341
        %v346 = vpack.c.b16 %v344, %v343
        %v350 = vsel %vm289, %v272, 0
        %352 = vmatprep.subr.bf16.mxu0 0
        %353 = vmatpush1.bf16.msra.mxu0 %v345
        %354 = vmatprep.subr.bf16.mxu0 0
        %355 = vmatpush1.bf16.msra.mxu0 %v346
        %356 = vmatprep.subr.bf16.mxu0 0
        %357 = vmatpush1.bf16.msra.mxu0 0
        %358 = vmatprep.subr.bf16.mxu0 0
        %359 = vmatpush1.bf16.msra.mxu0 0
        %360 = vmatprep.subr.bf16.mxu0 0
        %361 = vmatpush1.bf16.msra.mxu0 0
        %362 = vmatprep.subr.bf16.mxu0 0
        %363 = vmatpush1.bf16.msra.mxu0 0
        %364 = vmatprep.subr.bf16.mxu0 0
        %365 = vmatpush1.bf16.msra.mxu0 0
        %366 = vmatprep.subr.bf16.mxu0 0
        %367 = vmatpush1.bf16.msra.mxu0 0
        %368 = vmatprep.subr.bf16.mxu0 0
        %369 = vmatpush1.bf16.msra.mxu0 0
        %370 = vmatprep.subr.bf16.mxu0 0
        %371 = vmatpush1.bf16.msra.mxu0 0
        %372 = vmatprep.subr.bf16.mxu0 0
        %373 = vmatpush1.bf16.msra.mxu0 0
        %374 = vmatprep.subr.bf16.mxu0 0
        %375 = vmatpush1.bf16.msra.mxu0 0
        %376 = vmatprep.subr.bf16.mxu0 0
        %377 = vmatpush1.bf16.msra.mxu0 0
        %378 = vmatprep.subr.bf16.mxu0 0
        %379 = vmatpush1.bf16.msra.mxu0 0
        %380 = vmatprep.subr.bf16.mxu0 0
        %381 = vmatpush1.bf16.msra.mxu0 0
        %382 = vmatprep.subr.bf16.mxu0 0
        %383 = vmatpush1.bf16.msra.mxu0 0
        %384 = vmatprep.mubr.bf16.mxu0 0
        %385 = vmatmul.mubr.bf16.gmra.mrb[0].mxu0 %v350
        %v386 = vpop.f32.mrb[0].mxu0
        %v387 = vadd.f32 0.0, %v386
        %v388 = vpop.f32.mrb[0].mxu0
        %v389 = vpop.f32.mrb[0].mxu0
        %v390 = vadd.f32 0.0, %v389
        %v391 = vpop.f32.mrb[0].mxu0
        %392 = vdwg.mxu0
        %v393 = vpack.c.bf16 %v328, %v328
        %v394 = vpack.c.bf16 %v390, %v387
        %vm395 = vcmask 31744
        %v397 = vsel %vm395, %v393, 0
        %v400 = vsel %vm395, %v394, 0
        %402 = vmatprep.subr.bf16.mxu0 0
        %403 = vmatpush1.bf16.xpose.msra.mxu0 %v400
        %404 = vmatprep.subr.bf16.mxu0 0
        %405 = vmatpush1.bf16.xpose.msra.mxu0 0
        %406 = vmatprep.subr.bf16.mxu0 0
        %407 = vmatpush1.bf16.xpose.msra.mxu0 0
        %408 = vmatprep.subr.bf16.mxu0 0
        %409 = vmatpush1.bf16.xpose.msra.mxu0 0
        %410 = vmatprep.subr.bf16.mxu0 0
        %411 = vmatpush1.bf16.xpose.msra.mxu0 0
        %412 = vmatprep.subr.bf16.mxu0 0
        %413 = vmatpush1.bf16.xpose.msra.mxu0 0
        %414 = vmatprep.subr.bf16.mxu0 0
        %415 = vmatpush1.bf16.xpose.msra.mxu0 0
        %416 = vmatprep.subr.bf16.mxu0 0
        %417 = vmatpush1.bf16.xpose.msra.mxu0 0
        %418 = vmatprep.subr.bf16.mxu0 0
        %419 = vmatpush1.bf16.xpose.msra.mxu0 0
        %420 = vmatprep.subr.bf16.mxu0 0
        %421 = vmatpush1.bf16.xpose.msra.mxu0 0
        %422 = vmatprep.subr.bf16.mxu0 0
        %423 = vmatpush1.bf16.xpose.msra.mxu0 0
        %424 = vmatprep.subr.bf16.mxu0 0
        %425 = vmatpush1.bf16.xpose.msra.mxu0 0
        %426 = vmatprep.subr.bf16.mxu0 0
        %427 = vmatpush1.bf16.xpose.msra.mxu0 0
        %428 = vmatprep.subr.bf16.mxu0 0
        %429 = vmatpush1.bf16.xpose.msra.mxu0 0
        %430 = vmatprep.subr.bf16.mxu0 0
        %431 = vmatpush1.bf16.xpose.msra.mxu0 0
        %432 = vmatprep.subr.bf16.mxu0 0
        %433 = vmatpush1.bf16.xpose.msra.mxu0 0
        %434 = vmatprep.mubr.bf16.mxu0 0
        %435 = vmatmul.mubr.bf16.gmra.mrb[0].mxu0 %v397
        %v436 = vpop.f32.mrb[0].mxu0
        %v437 = vadd.f32 0.0, %v436
        %v438 = vpop.f32.mrb[0].mxu0
        %v439 = vpop.f32.mrb[0].mxu0
        %v440 = vpop.f32.mrb[0].mxu0
        %441 = vdwg.mxu0
        %vm442 = vcmask 130048
        %v443 = vsel %vm442, %v437, -inf
        %444 = vmax.xlane.f32.xlu0 %v443
        %v445 = vpop.xlane.xlu0 %444
        %v446 = vsub.f32 %v437, %v445
        %v447 = vmul.f32 %v446, 1.442695
        %v448 = vpow.pop %v447
        %v449 = vsel %vm442, %v448, 0.0
        %450 = vadd.xlane.f32.xlu0 %v449
        %v451 = vpop.xlane.xlu0 %450
        %v452 = vrcp.pop %v451
        %v453 = vmul.f32 %v448, %v452
        %v454 = vpack.c.bf16 %v453, %v453
        %456 = vrot.lane.b32.xlu0 %v394, 96
        %v457 = vpop.permute.xlu0 %456
        %v460 = vsel %vm442, %v454, 0
        %462 = vmatprep.subr.bf16.mxu0 0
        %463 = vmatpush1.bf16.msra.mxu0 %v457
        %464 = vmatprep.subr.bf16.mxu0 0
        %465 = vmatpush1.bf16.msra.mxu0 0
        %466 = vmatprep.subr.bf16.mxu0 0
        %467 = vmatpush1.bf16.msra.mxu0 0
        %468 = vmatprep.subr.bf16.mxu0 0
        %469 = vmatpush1.bf16.msra.mxu0 0
        %470 = vmatprep.subr.bf16.mxu0 0
        %471 = vmatpush1.bf16.msra.mxu0 0
        %472 = vmatprep.subr.bf16.mxu0 0
        %473 = vmatpush1.bf16.msra.mxu0 0
        %474 = vmatprep.subr.bf16.mxu0 0
        %475 = vmatpush1.bf16.msra.mxu0 0
        %476 = vmatprep.subr.bf16.mxu0 0
        %477 = vmatpush1.bf16.msra.mxu0 0
        %478 = vmatprep.subr.bf16.mxu0 0
        %479 = vmatpush1.bf16.msra.mxu0 0
        %480 = vmatprep.subr.bf16.mxu0 0
        %481 = vmatpush1.bf16.msra.mxu0 0
        %482 = vmatprep.subr.bf16.mxu0 0
        %483 = vmatpush1.bf16.msra.mxu0 0
        %484 = vmatprep.subr.bf16.mxu0 0
        %485 = vmatpush1.bf16.msra.mxu0 0
        %486 = vmatprep.subr.bf16.mxu0 0
        %487 = vmatpush1.bf16.msra.mxu0 0
        %488 = vmatprep.subr.bf16.mxu0 0
        %489 = vmatpush1.bf16.msra.mxu0 0
        %490 = vmatprep.subr.bf16.mxu0 0
        %491 = vmatpush1.bf16.msra.mxu0 0
        %492 = vmatprep.subr.bf16.mxu0 0
        %493 = vmatpush1.bf16.msra.mxu0 0
        %494 = vmatprep.mubr.bf16.mxu0 0
        %495 = vmatmul.mubr.bf16.gmra.mrb[0].mxu0 %v460
        %v496 = vpop.f32.mrb[0].mxu0
        %v497 = vadd.f32 0.0, %v496
        %v498 = vpop.f32.mrb[0].mxu0
        %v499 = vpop.f32.mrb[0].mxu0
        %v500 = vpop.f32.mrb[0].mxu0
        %501 = vdwg.mxu0
        %503 = vrot.lane.b32.xlu0 %v393, 124
        %v504 = vpop.permute.xlu0 %503
        %505 = vrot.lane.b32.xlu0 %v394, 124
        %v506 = vpop.permute.xlu0 %505
        %v508 = vsel %vm395, %v504, 0
        %v511 = vsel %vm395, %v506, 0
        %513 = vmatprep.subr.bf16.mxu0 0
        %514 = vmatpush1.bf16.xpose.msra.mxu0 %v511
        %515 = vmatprep.subr.bf16.mxu0 0
        %516 = vmatpush1.bf16.xpose.msra.mxu0 0
        %517 = vmatprep.subr.bf16.mxu0 0
        %518 = vmatpush1.bf16.xpose.msra.mxu0 0
        %519 = vmatprep.subr.bf16.mxu0 0
        %520 = vmatpush1.bf16.xpose.msra.mxu0 0
        %521 = vmatprep.subr.bf16.mxu0 0
        %522 = vmatpush1.bf16.xpose.msra.mxu0 0
        %523 = vmatprep.subr.bf16.mxu0 0
        %524 = vmatpush1.bf16.xpose.msra.mxu0 0
        %525 = vmatprep.subr.bf16.mxu0 0
        %526 = vmatpush1.bf16.xpose.msra.mxu0 0
        %527 = vmatprep.subr.bf16.mxu0 0
        %528 = vmatpush1.bf16.xpose.msra.mxu0 0
        %529 = vmatprep.subr.bf16.mxu0 0
        %530 = vmatpush1.bf16.xpose.msra.mxu0 0
        %531 = vmatprep.subr.bf16.mxu0 0
        %532 = vmatpush1.bf16.xpose.msra.mxu0 0
        %533 = vmatprep.subr.bf16.mxu0 0
        %534 = vmatpush1.bf16.xpose.msra.mxu0 0
        %535 = vmatprep.subr.bf16.mxu0 0
        %536 = vmatpush1.bf16.xpose.msra.mxu0 0
        %537 = vmatprep.subr.bf16.mxu0 0
        %538 = vmatpush1.bf16.xpose.msra.mxu0 0
        %539 = vmatprep.subr.bf16.mxu0 0
        %540 = vmatpush1.bf16.xpose.msra.mxu0 0
        %541 = vmatprep.subr.bf16.mxu0 0
        %542 = vmatpush1.bf16.xpose.msra.mxu0 0
        %543 = vmatprep.subr.bf16.mxu0 0
        %544 = vmatpush1.bf16.xpose.msra.mxu0 0
        %545 = vmatprep.mubr.bf16.mxu0 0
        %546 = vmatmul.mubr.bf16.gmra.mrb[0].mxu0 %v508
        %v547 = vpop.f32.mrb[0].mxu0
        %v548 = vadd.f32 0.0, %v547
        %v549 = vpop.f32.mrb[0].mxu0
        %v550 = vpop.f32.mrb[0].mxu0
        %v551 = vpop.f32.mrb[0].mxu0
        %552 = vdwg.mxu0
        %v553 = vsel %vm442, %v548, -inf
        %554 = vmax.xlane.f32.xlu0 %v553
        %v555 = vpop.xlane.xlu0 %554
        %v556 = vsub.f32 %v548, %v555
        %v557 = vmul.f32 %v556, 1.442695
        %v558 = vpow.pop %v557
        %v559 = vsel %vm442, %v558, 0.0
        %560 = vadd.xlane.f32.xlu0 %v559
        %v561 = vpop.xlane.xlu0 %560
        %v562 = vrcp.pop %v561
        %v563 = vmul.f32 %v558, %v562
        %v564 = vpack.c.bf16 %v563, %v563
        %565 = vrot.lane.b32.xlu0 %v394, 92
        %v566 = vpop.permute.xlu0 %565
        %v569 = vsel %vm442, %v564, 0
        %571 = vmatprep.subr.bf16.mxu0 0
        %572 = vmatpush1.bf16.msra.mxu0 %v566
        %573 = vmatprep.subr.bf16.mxu0 0
        %574 = vmatpush1.bf16.msra.mxu0 0
        %575 = vmatprep.subr.bf16.mxu0 0
        %576 = vmatpush1.bf16.msra.mxu0 0
        %577 = vmatprep.subr.bf16.mxu0 0
        %578 = vmatpush1.bf16.msra.mxu0 0
        %579 = vmatprep.subr.bf16.mxu0 0
        %580 = vmatpush1.bf16.msra.mxu0 0
        %581 = vmatprep.subr.bf16.mxu0 0
        %582 = vmatpush1.bf16.msra.mxu0 0
        %583 = vmatprep.subr.bf16.mxu0 0
        %584 = vmatpush1.bf16.msra.mxu0 0
        %585 = vmatprep.subr.bf16.mxu0 0
        %586 = vmatpush1.bf16.msra.mxu0 0
        %587 = vmatprep.subr.bf16.mxu0 0
        %588 = vmatpush1.bf16.msra.mxu0 0
        %589 = vmatprep.subr.bf16.mxu0 0
        %590 = vmatpush1.bf16.msra.mxu0 0
        %591 = vmatprep.subr.bf16.mxu0 0
        %592 = vmatpush1.bf16.msra.mxu0 0
        %593 = vmatprep.subr.bf16.mxu0 0
        %594 = vmatpush1.bf16.msra.mxu0 0
        %595 = vmatprep.subr.bf16.mxu0 0
        %596 = vmatpush1.bf16.msra.mxu0 0
        %597 = vmatprep.subr.bf16.mxu0 0
        %598 = vmatpush1.bf16.msra.mxu0 0
        %599 = vmatprep.subr.bf16.mxu0 0
        %600 = vmatpush1.bf16.msra.mxu0 0
        %601 = vmatprep.subr.bf16.mxu0 0
        %602 = vmatpush1.bf16.msra.mxu0 0
        %603 = vmatprep.mubr.bf16.mxu0 0
        %604 = vmatmul.mubr.bf16.gmra.mrb[0].mxu0 %v569
        %v605 = vpop.f32.mrb[0].mxu0
        %v606 = vadd.f32 0.0, %v605
        %v607 = vpop.f32.mrb[0].mxu0
        %v608 = vpop.f32.mrb[0].mxu0
        %v609 = vpop.f32.mrb[0].mxu0
        %610 = vdwg.mxu0
        %611 = vrot.lane.b32.xlu0 %v393, 120
        %v612 = vpop.permute.xlu0 %611
        %613 = vrot.lane.b32.xlu0 %v394, 120
        %v614 = vpop.permute.xlu0 %613
        %v616 = vsel %vm395, %v612, 0
        %v619 = vsel %vm395, %v614, 0
        %621 = vmatprep.subr.bf16.mxu0 0
        %622 = vmatpush1.bf16.xpose.msra.mxu0 %v619
        %623 = vmatprep.subr.bf16.mxu0 0
        %624 = vmatpush1.bf16.xpose.msra.mxu0 0
        %625 = vmatprep.subr.bf16.mxu0 0
        %626 = vmatpush1.bf16.xpose.msra.mxu0 0
        %627 = vmatprep.subr.bf16.mxu0 0
        %628 = vmatpush1.bf16.xpose.msra.mxu0 0
        %629 = vmatprep.subr.bf16.mxu0 0
        %630 = vmatpush1.bf16.xpose.msra.mxu0 0
        %631 = vmatprep.subr.bf16.mxu0 0
        %632 = vmatpush1.bf16.xpose.msra.mxu0 0
        %633 = vmatprep.subr.bf16.mxu0 0
        %634 = vmatpush1.bf16.xpose.msra.mxu0 0
        %635 = vmatprep.subr.bf16.mxu0 0
        %636 = vmatpush1.bf16.xpose.msra.mxu0 0
        %637 = vmatprep.subr.bf16.mxu0 0
        %638 = vmatpush1.bf16.xpose.msra.mxu0 0
        %639 = vmatprep.subr.bf16.mxu0 0
        %640 = vmatpush1.bf16.xpose.msra.mxu0 0
        %641 = vmatprep.subr.bf16.mxu0 0
        %642 = vmatpush1.bf16.xpose.msra.mxu0 0
        %643 = vmatprep.subr.bf16.mxu0 0
        %644 = vmatpush1.bf16.xpose.msra.mxu0 0
        %645 = vmatprep.subr.bf16.mxu0 0
        %646 = vmatpush1.bf16.xpose.msra.mxu0 0
        %647 = vmatprep.subr.bf16.mxu0 0
        %648 = vmatpush1.bf16.xpose.msra.mxu0 0
        %649 = vmatprep.subr.bf16.mxu0 0
        %650 = vmatpush1.bf16.xpose.msra.mxu0 0
        %651 = vmatprep.subr.bf16.mxu0 0
        %652 = vmatpush1.bf16.xpose.msra.mxu0 0
        %653 = vmatprep.mubr.bf16.mxu0 0
        %654 = vmatmul.mubr.bf16.gmra.mrb[0].mxu0 %v616
        %v655 = vpop.f32.mrb[0].mxu0
        %v656 = vadd.f32 0.0, %v655
        %v657 = vpop.f32.mrb[0].mxu0
        %v658 = vpop.f32.mrb[0].mxu0
        %v659 = vpop.f32.mrb[0].mxu0
        %660 = vdwg.mxu0
        %v661 = vsel %vm442, %v656, -inf
        %662 = vmax.xlane.f32.xlu0 %v661
        %v663 = vpop.xlane.xlu0 %662
        %v664 = vsub.f32 %v656, %v663
        %v665 = vmul.f32 %v664, 1.442695
        %v666 = vpow.pop %v665
        %v667 = vsel %vm442, %v666, 0.0
        %668 = vadd.xlane.f32.xlu0 %v667
        %v669 = vpop.xlane.xlu0 %668
        %v670 = vrcp.pop %v669
        %v671 = vmul.f32 %v666, %v670
        %v672 = vpack.c.bf16 %v671, %v671
        %673 = vrot.lane.b32.xlu0 %v394, 88
        %v674 = vpop.permute.xlu0 %673
        %v677 = vsel %vm442, %v672, 0
        %679 = vmatprep.subr.bf16.mxu0 0
        %680 = vmatpush1.bf16.msra.mxu0 %v674
        %681 = vmatprep.subr.bf16.mxu0 0
        %682 = vmatpush1.bf16.msra.mxu0 0
        %683 = vmatprep.subr.bf16.mxu0 0
        %684 = vmatpush1.bf16.msra.mxu0 0
        %685 = vmatprep.subr.bf16.mxu0 0
        %686 = vmatpush1.bf16.msra.mxu0 0
        %687 = vmatprep.subr.bf16.mxu0 0
        %688 = vmatpush1.bf16.msra.mxu0 0
        %689 = vmatprep.subr.bf16.mxu0 0
        %690 = vmatpush1.bf16.msra.mxu0 0
        %691 = vmatprep.subr.bf16.mxu0 0
        %692 = vmatpush1.bf16.msra.mxu0 0
        %693 = vmatprep.subr.bf16.mxu0 0
        %694 = vmatpush1.bf16.msra.mxu0 0
        %695 = vmatprep.subr.bf16.mxu0 0
        %696 = vmatpush1.bf16.msra.mxu0 0
        %697 = vmatprep.subr.bf16.mxu0 0
        %698 = vmatpush1.bf16.msra.mxu0 0
        %699 = vmatprep.subr.bf16.mxu0 0
        %700 = vmatpush1.bf16.msra.mxu0 0
        %701 = vmatprep.subr.bf16.mxu0 0
        %702 = vmatpush1.bf16.msra.mxu0 0
        %703 = vmatprep.subr.bf16.mxu0 0
        %704 = vmatpush1.bf16.msra.mxu0 0
        %705 = vmatprep.subr.bf16.mxu0 0
        %706 = vmatpush1.bf16.msra.mxu0 0
        %707 = vmatprep.subr.bf16.mxu0 0
        %708 = vmatpush1.bf16.msra.mxu0 0
        %709 = vmatprep.subr.bf16.mxu0 0
        %710 = vmatpush1.bf16.msra.mxu0 0
        %711 = vmatprep.mubr.bf16.mxu0 0
        %712 = vmatmul.mubr.bf16.gmra.mrb[0].mxu0 %v677
        %v713 = vpop.f32.mrb[0].mxu0
        %v714 = vadd.f32 0.0, %v713
        %v715 = vpop.f32.mrb[0].mxu0
        %v716 = vpop.f32.mrb[0].mxu0
        %v717 = vpop.f32.mrb[0].mxu0
        %718 = vdwg.mxu0
        %719 = vrot.lane.b32.xlu0 %v393, 116
        %v720 = vpop.permute.xlu0 %719
        %721 = vrot.lane.b32.xlu0 %v394, 116
        %v722 = vpop.permute.xlu0 %721
        %v724 = vsel %vm395, %v720, 0
        %v727 = vsel %vm395, %v722, 0
        %729 = vmatprep.subr.bf16.mxu0 0
        %730 = vmatpush1.bf16.xpose.msra.mxu0 %v727
        %731 = vmatprep.subr.bf16.mxu0 0
        %732 = vmatpush1.bf16.xpose.msra.mxu0 0
        %733 = vmatprep.subr.bf16.mxu0 0
        %734 = vmatpush1.bf16.xpose.msra.mxu0 0
        %735 = vmatprep.subr.bf16.mxu0 0
        %736 = vmatpush1.bf16.xpose.msra.mxu0 0
        %737 = vmatprep.subr.bf16.mxu0 0
        %738 = vmatpush1.bf16.xpose.msra.mxu0 0
        %739 = vmatprep.subr.bf16.mxu0 0
        %740 = vmatpush1.bf16.xpose.msra.mxu0 0
        %741 = vmatprep.subr.bf16.mxu0 0
        %742 = vmatpush1.bf16.xpose.msra.mxu0 0
        %743 = vmatprep.subr.bf16.mxu0 0
        %744 = vmatpush1.bf16.xpose.msra.mxu0 0
        %745 = vmatprep.subr.bf16.mxu0 0
        %746 = vmatpush1.bf16.xpose.msra.mxu0 0
        %747 = vmatprep.subr.bf16.mxu0 0
        %748 = vmatpush1.bf16.xpose.msra.mxu0 0
        %749 = vmatprep.subr.bf16.mxu0 0
        %750 = vmatpush1.bf16.xpose.msra.mxu0 0
        %751 = vmatprep.subr.bf16.mxu0 0
        %752 = vmatpush1.bf16.xpose.msra.mxu0 0
        %753 = vmatprep.subr.bf16.mxu0 0
        %754 = vmatpush1.bf16.xpose.msra.mxu0 0
        %755 = vmatprep.subr.bf16.mxu0 0
        %756 = vmatpush1.bf16.xpose.msra.mxu0 0
        %757 = vmatprep.subr.bf16.mxu0 0
        %758 = vmatpush1.bf16.xpose.msra.mxu0 0
        %759 = vmatprep.subr.bf16.mxu0 0
        %760 = vmatpush1.bf16.xpose.msra.mxu0 0
        %761 = vmatprep.mubr.bf16.mxu0 0
        %762 = vmatmul.mubr.bf16.gmra.mrb[0].mxu0 %v724
        %v763 = vpop.f32.mrb[0].mxu0
        %v764 = vadd.f32 0.0, %v763
        %v765 = vpop.f32.mrb[0].mxu0
        %v766 = vpop.f32.mrb[0].mxu0
        %v767 = vpop.f32.mrb[0].mxu0
        %768 = vdwg.mxu0
        %v769 = vsel %vm442, %v764, -inf
        %770 = vmax.xlane.f32.xlu0 %v769
        %v771 = vpop.xlane.xlu0 %770
        %v772 = vsub.f32 %v764, %v771
        %v773 = vmul.f32 %v772, 1.442695
        %v774 = vpow.pop %v773
        %v775 = vsel %vm442, %v774, 0.0
        %776 = vadd.xlane.f32.xlu0 %v775
        %v777 = vpop.xlane.xlu0 %776
        %v778 = vrcp.pop %v777
        %v779 = vmul.f32 %v774, %v778
        %v780 = vpack.c.bf16 %v779, %v779
        %781 = vrot.lane.b32.xlu0 %v394, 84
        %v782 = vpop.permute.xlu0 %781
        %v785 = vsel %vm442, %v780, 0
        %787 = vmatprep.subr.bf16.mxu0 0
        %788 = vmatpush1.bf16.msra.mxu0 %v782
        %789 = vmatprep.subr.bf16.mxu0 0
        %790 = vmatpush1.bf16.msra.mxu0 0
        %791 = vmatprep.subr.bf16.mxu0 0
        %792 = vmatpush1.bf16.msra.mxu0 0
        %793 = vmatprep.subr.bf16.mxu0 0
        %794 = vmatpush1.bf16.msra.mxu0 0
        %795 = vmatprep.subr.bf16.mxu0 0
        %796 = vmatpush1.bf16.msra.mxu0 0
        %797 = vmatprep.subr.bf16.mxu0 0
        %798 = vmatpush1.bf16.msra.mxu0 0
        %799 = vmatprep.subr.bf16.mxu0 0
        %800 = vmatpush1.bf16.msra.mxu0 0
        %801 = vmatprep.subr.bf16.mxu0 0
        %802 = vmatpush1.bf16.msra.mxu0 0
        %803 = vmatprep.subr.bf16.mxu0 0
        %804 = vmatpush1.bf16.msra.mxu0 0
        %805 = vmatprep.subr.bf16.mxu0 0
        %806 = vmatpush1.bf16.msra.mxu0 0
        %807 = vmatprep.subr.bf16.mxu0 0
        %808 = vmatpush1.bf16.msra.mxu0 0
        %809 = vmatprep.subr.bf16.mxu0 0
        %810 = vmatpush1.bf16.msra.mxu0 0
        %811 = vmatprep.subr.bf16.mxu0 0
        %812 = vmatpush1.bf16.msra.mxu0 0
        %813 = vmatprep.subr.bf16.mxu0 0
        %814 = vmatpush1.bf16.msra.mxu0 0
        %815 = vmatprep.subr.bf16.mxu0 0
        %816 = vmatpush1.bf16.msra.mxu0 0
        %817 = vmatprep.subr.bf16.mxu0 0
        %818 = vmatpush1.bf16.msra.mxu0 0
        %819 = vmatprep.mubr.bf16.mxu0 0
        %820 = vmatmul.mubr.bf16.gmra.mrb[0].mxu0 %v785
        %v821 = vpop.f32.mrb[0].mxu0
        %v822 = vadd.f32 0.0, %v821
        %v823 = vpop.f32.mrb[0].mxu0
        %v824 = vpop.f32.mrb[0].mxu0
        %v825 = vpop.f32.mrb[0].mxu0
        %826 = vdwg.mxu0
        %827 = vrot.lane.b32.xlu0 %v393, 112
        %v828 = vpop.permute.xlu0 %827
        %829 = vrot.lane.b32.xlu0 %v394, 112
        %v830 = vpop.permute.xlu0 %829
        %v832 = vsel %vm395, %v828, 0
        %v835 = vsel %vm395, %v830, 0
        %837 = vmatprep.subr.bf16.mxu0 0
        %838 = vmatpush1.bf16.xpose.msra.mxu0 %v835
        %839 = vmatprep.subr.bf16.mxu0 0
        %840 = vmatpush1.bf16.xpose.msra.mxu0 0
        %841 = vmatprep.subr.bf16.mxu0 0
        %842 = vmatpush1.bf16.xpose.msra.mxu0 0
        %843 = vmatprep.subr.bf16.mxu0 0
        %844 = vmatpush1.bf16.xpose.msra.mxu0 0
        %845 = vmatprep.subr.bf16.mxu0 0
        %846 = vmatpush1.bf16.xpose.msra.mxu0 0
        %847 = vmatprep.subr.bf16.mxu0 0
        %848 = vmatpush1.bf16.xpose.msra.mxu0 0
        %849 = vmatprep.subr.bf16.mxu0 0
        %850 = vmatpush1.bf16.xpose.msra.mxu0 0
        %851 = vmatprep.subr.bf16.mxu0 0
        %852 = vmatpush1.bf16.xpose.msra.mxu0 0
        %853 = vmatprep.subr.bf16.mxu0 0
        %854 = vmatpush1.bf16.xpose.msra.mxu0 0
        %855 = vmatprep.subr.bf16.mxu0 0
        %856 = vmatpush1.bf16.xpose.msra.mxu0 0
        %857 = vmatprep.subr.bf16.mxu0 0
        %858 = vmatpush1.bf16.xpose.msra.mxu0 0
        %859 = vmatprep.subr.bf16.mxu0 0
        %860 = vmatpush1.bf16.xpose.msra.mxu0 0
        %861 = vmatprep.subr.bf16.mxu0 0
        %862 = vmatpush1.bf16.xpose.msra.mxu0 0
        %863 = vmatprep.subr.bf16.mxu0 0
        %864 = vmatpush1.bf16.xpose.msra.mxu0 0
        %865 = vmatprep.subr.bf16.mxu0 0
        %866 = vmatpush1.bf16.xpose.msra.mxu0 0
        %867 = vmatprep.subr.bf16.mxu0 0
        %868 = vmatpush1.bf16.xpose.msra.mxu0 0
        %869 = vmatprep.mubr.bf16.mxu0 0
        %870 = vmatmul.mubr.bf16.gmra.mrb[0].mxu0 %v832
        %v871 = vpop.f32.mrb[0].mxu0
        %v872 = vadd.f32 0.0, %v871
        %v873 = vpop.f32.mrb[0].mxu0
        %v874 = vpop.f32.mrb[0].mxu0
        %v875 = vpop.f32.mrb[0].mxu0
        %876 = vdwg.mxu0
        %v877 = vsel %vm442, %v872, -inf
        %878 = vmax.xlane.f32.xlu0 %v877
        %v879 = vpop.xlane.xlu0 %878
        %v880 = vsub.f32 %v872, %v879
        %v881 = vmul.f32 %v880, 1.442695
        %v882 = vpow.pop %v881
        %v883 = vsel %vm442, %v882, 0.0
        %884 = vadd.xlane.f32.xlu0 %v883
        %v885 = vpop.xlane.xlu0 %884
        %v886 = vrcp.pop %v885
        %v887 = vmul.f32 %v882, %v886
        %v888 = vpack.c.bf16 %v887, %v887
        %889 = vrot.lane.b32.xlu0 %v394, 80
        %v890 = vpop.permute.xlu0 %889
        %v893 = vsel %vm442, %v888, 0
        %895 = vmatprep.subr.bf16.mxu0 0
        %896 = vmatpush1.bf16.msra.mxu0 %v890
        %897 = vmatprep.subr.bf16.mxu0 0
        %898 = vmatpush1.bf16.msra.mxu0 0
        %899 = vmatprep.subr.bf16.mxu0 0
        %900 = vmatpush1.bf16.msra.mxu0 0
        %901 = vmatprep.subr.bf16.mxu0 0
        %902 = vmatpush1.bf16.msra.mxu0 0
        %903 = vmatprep.subr.bf16.mxu0 0
        %904 = vmatpush1.bf16.msra.mxu0 0
        %905 = vmatprep.subr.bf16.mxu0 0
        %906 = vmatpush1.bf16.msra.mxu0 0
        %907 = vmatprep.subr.bf16.mxu0 0
        %908 = vmatpush1.bf16.msra.mxu0 0
        %909 = vmatprep.subr.bf16.mxu0 0
        %910 = vmatpush1.bf16.msra.mxu0 0
        %911 = vmatprep.subr.bf16.mxu0 0
        %912 = vmatpush1.bf16.msra.mxu0 0
        %913 = vmatprep.subr.bf16.mxu0 0
        %914 = vmatpush1.bf16.msra.mxu0 0
        %915 = vmatprep.subr.bf16.mxu0 0
        %916 = vmatpush1.bf16.msra.mxu0 0
        %917 = vmatprep.subr.bf16.mxu0 0
        %918 = vmatpush1.bf16.msra.mxu0 0
        %919 = vmatprep.subr.bf16.mxu0 0
        %920 = vmatpush1.bf16.msra.mxu0 0
        %921 = vmatprep.subr.bf16.mxu0 0
        %922 = vmatpush1.bf16.msra.mxu0 0
        %923 = vmatprep.subr.bf16.mxu0 0
        %924 = vmatpush1.bf16.msra.mxu0 0
        %925 = vmatprep.subr.bf16.mxu0 0
        %926 = vmatpush1.bf16.msra.mxu0 0
        %927 = vmatprep.mubr.bf16.mxu0 0
        %928 = vmatmul.mubr.bf16.gmra.mrb[0].mxu0 %v893
        %v929 = vpop.f32.mrb[0].mxu0
        %v930 = vadd.f32 0.0, %v929
        %v931 = vpop.f32.mrb[0].mxu0
        %v932 = vpop.f32.mrb[0].mxu0
        %v933 = vpop.f32.mrb[0].mxu0
        %934 = vdwg.mxu0
        %935 = vrot.lane.b32.xlu0 %v393, 108
        %v936 = vpop.permute.xlu0 %935
        %937 = vrot.lane.b32.xlu0 %v394, 108
        %v938 = vpop.permute.xlu0 %937
        %v940 = vsel %vm395, %v936, 0
        %v943 = vsel %vm395, %v938, 0
        %945 = vmatprep.subr.bf16.mxu0 0
        %946 = vmatpush1.bf16.xpose.msra.mxu0 %v943
        %947 = vmatprep.subr.bf16.mxu0 0
        %948 = vmatpush1.bf16.xpose.msra.mxu0 0
        %949 = vmatprep.subr.bf16.mxu0 0
        %950 = vmatpush1.bf16.xpose.msra.mxu0 0
        %951 = vmatprep.subr.bf16.mxu0 0
        %952 = vmatpush1.bf16.xpose.msra.mxu0 0
        %953 = vmatprep.subr.bf16.mxu0 0
        %954 = vmatpush1.bf16.xpose.msra.mxu0 0
        %955 = vmatprep.subr.bf16.mxu0 0
        %956 = vmatpush1.bf16.xpose.msra.mxu0 0
        %957 = vmatprep.subr.bf16.mxu0 0
        %958 = vmatpush1.bf16.xpose.msra.mxu0 0
        %959 = vmatprep.subr.bf16.mxu0 0
        %960 = vmatpush1.bf16.xpose.msra.mxu0 0
        %961 = vmatprep.subr.bf16.mxu0 0
        %962 = vmatpush1.bf16.xpose.msra.mxu0 0
        %963 = vmatprep.subr.bf16.mxu0 0
        %964 = vmatpush1.bf16.xpose.msra.mxu0 0
        %965 = vmatprep.subr.bf16.mxu0 0
        %966 = vmatpush1.bf16.xpose.msra.mxu0 0
        %967 = vmatprep.subr.bf16.mxu0 0
        %968 = vmatpush1.bf16.xpose.msra.mxu0 0
        %969 = vmatprep.subr.bf16.mxu0 0
        %970 = vmatpush1.bf16.xpose.msra.mxu0 0
        %971 = vmatprep.subr.bf16.mxu0 0
        %972 = vmatpush1.bf16.xpose.msra.mxu0 0
        %973 = vmatprep.subr.bf16.mxu0 0
        %974 = vmatpush1.bf16.xpose.msra.mxu0 0
        %975 = vmatprep.subr.bf16.mxu0 0
        %976 = vmatpush1.bf16.xpose.msra.mxu0 0
        %977 = vmatprep.mubr.bf16.mxu0 0
        %978 = vmatmul.mubr.bf16.gmra.mrb[0].mxu0 %v940
        %v979 = vpop.f32.mrb[0].mxu0
        %v980 = vadd.f32 0.0, %v979
        %v981 = vpop.f32.mrb[0].mxu0
        %v982 = vpop.f32.mrb[0].mxu0
        %v983 = vpop.f32.mrb[0].mxu0
        %984 = vdwg.mxu0
        %v985 = vsel %vm442, %v980, -inf
        %986 = vmax.xlane.f32.xlu0 %v985
        %v987 = vpop.xlane.xlu0 %986
        %v988 = vsub.f32 %v980, %v987
        %v989 = vmul.f32 %v988, 1.442695
        %v990 = vpow.pop %v989
        %v991 = vsel %vm442, %v990, 0.0
        %992 = vadd.xlane.f32.xlu0 %v991
        %v993 = vpop.xlane.xlu0 %992
        %v994 = vrcp.pop %v993
        %v995 = vmul.f32 %v990, %v994
        %v996 = vpack.c.bf16 %v995, %v995
        %997 = vrot.lane.b32.xlu0 %v394, 76
        %v998 = vpop.permute.xlu0 %997
        %v1001 = vsel %vm442, %v996, 0
        %1003 = vmatprep.subr.bf16.mxu0 0
        %1004 = vmatpush1.bf16.msra.mxu0 %v998
        %1005 = vmatprep.subr.bf16.mxu0 0
        %1006 = vmatpush1.bf16.msra.mxu0 0
        %1007 = vmatprep.subr.bf16.mxu0 0
        %1008 = vmatpush1.bf16.msra.mxu0 0
        %1009 = vmatprep.subr.bf16.mxu0 0
        %1010 = vmatpush1.bf16.msra.mxu0 0
        %1011 = vmatprep.subr.bf16.mxu0 0
        %1012 = vmatpush1.bf16.msra.mxu0 0
        %1013 = vmatprep.subr.bf16.mxu0 0
        %1014 = vmatpush1.bf16.msra.mxu0 0
        %1015 = vmatprep.subr.bf16.mxu0 0
        %1016 = vmatpush1.bf16.msra.mxu0 0
        %1017 = vmatprep.subr.bf16.mxu0 0
        %1018 = vmatpush1.bf16.msra.mxu0 0
        %1019 = vmatprep.subr.bf16.mxu0 0
        %1020 = vmatpush1.bf16.msra.mxu0 0
        %1021 = vmatprep.subr.bf16.mxu0 0
        %1022 = vmatpush1.bf16.msra.mxu0 0
        %1023 = vmatprep.subr.bf16.mxu0 0
        %1024 = vmatpush1.bf16.msra.mxu0 0
        %1025 = vmatprep.subr.bf16.mxu0 0
        %1026 = vmatpush1.bf16.msra.mxu0 0
        %1027 = vmatprep.subr.bf16.mxu0 0
        %1028 = vmatpush1.bf16.msra.mxu0 0
        %1029 = vmatprep.subr.bf16.mxu0 0
        %1030 = vmatpush1.bf16.msra.mxu0 0
        %1031 = vmatprep.subr.bf16.mxu0 0
        %1032 = vmatpush1.bf16.msra.mxu0 0
        %1033 = vmatprep.subr.bf16.mxu0 0
        %1034 = vmatpush1.bf16.msra.mxu0 0
        %1035 = vmatprep.mubr.bf16.mxu0 0
        %1036 = vmatmul.mubr.bf16.gmra.mrb[0].mxu0 %v1001
        %v1037 = vpop.f32.mrb[0].mxu0
        %v1038 = vadd.f32 0.0, %v1037
        %v1039 = vpop.f32.mrb[0].mxu0
        %v1040 = vpop.f32.mrb[0].mxu0
        %v1041 = vpop.f32.mrb[0].mxu0
        %1042 = vdwg.mxu0
        %1043 = vrot.lane.b32.xlu0 %v393, 104
        %v1044 = vpop.permute.xlu0 %1043
        %1045 = vrot.lane.b32.xlu0 %v394, 104
        %v1046 = vpop.permute.xlu0 %1045
        %v1048 = vsel %vm395, %v1044, 0
        %v1051 = vsel %vm395, %v1046, 0
        %1053 = vmatprep.subr.bf16.mxu0 0
        %1054 = vmatpush1.bf16.xpose.msra.mxu0 %v1051
        %1055 = vmatprep.subr.bf16.mxu0 0
        %1056 = vmatpush1.bf16.xpose.msra.mxu0 0
        %1057 = vmatprep.subr.bf16.mxu0 0
        %1058 = vmatpush1.bf16.xpose.msra.mxu0 0
        %1059 = vmatprep.subr.bf16.mxu0 0
        %1060 = vmatpush1.bf16.xpose.msra.mxu0 0
        %1061 = vmatprep.subr.bf16.mxu0 0
        %1062 = vmatpush1.bf16.xpose.msra.mxu0 0
        %1063 = vmatprep.subr.bf16.mxu0 0
        %1064 = vmatpush1.bf16.xpose.msra.mxu0 0
        %1065 = vmatprep.subr.bf16.mxu0 0
        %1066 = vmatpush1.bf16.xpose.msra.mxu0 0
        %1067 = vmatprep.subr.bf16.mxu0 0
        %1068 = vmatpush1.bf16.xpose.msra.mxu0 0
        %1069 = vmatprep.subr.bf16.mxu0 0
        %1070 = vmatpush1.bf16.xpose.msra.mxu0 0
        %1071 = vmatprep.subr.bf16.mxu0 0
        %1072 = vmatpush1.bf16.xpose.msra.mxu0 0
        %1073 = vmatprep.subr.bf16.mxu0 0
        %1074 = vmatpush1.bf16.xpose.msra.mxu0 0
        %1075 = vmatprep.subr.bf16.mxu0 0
        %1076 = vmatpush1.bf16.xpose.msra.mxu0 0
        %1077 = vmatprep.subr.bf16.mxu0 0
        %1078 = vmatpush1.bf16.xpose.msra.mxu0 0
        %1079 = vmatprep.subr.bf16.mxu0 0
        %1080 = vmatpush1.bf16.xpose.msra.mxu0 0
        %1081 = vmatprep.subr.bf16.mxu0 0
        %1082 = vmatpush1.bf16.xpose.msra.mxu0 0
        %1083 = vmatprep.subr.bf16.mxu0 0
        %1084 = vmatpush1.bf16.xpose.msra.mxu0 0
        %1085 = vmatprep.mubr.bf16.mxu0 0
        %1086 = vmatmul.mubr.bf16.gmra.mrb[0].mxu0 %v1048
        %v1087 = vpop.f32.mrb[0].mxu0
        %v1088 = vadd.f32 0.0, %v1087
        %v1089 = vpop.f32.mrb[0].mxu0
        %v1090 = vpop.f32.mrb[0].mxu0
        %v1091 = vpop.f32.mrb[0].mxu0
        %1092 = vdwg.mxu0
        %v1093 = vsel %vm442, %v1088, -inf
        %1094 = vmax.xlane.f32.xlu0 %v1093
        %v1095 = vpop.xlane.xlu0 %1094
        %v1096 = vsub.f32 %v1088, %v1095
        %v1097 = vmul.f32 %v1096, 1.442695
        %v1098 = vpow.pop %v1097
        %v1099 = vsel %vm442, %v1098, 0.0
        %1100 = vadd.xlane.f32.xlu0 %v1099
        %v1101 = vpop.xlane.xlu0 %1100
        %v1102 = vrcp.pop %v1101
        %v1103 = vmul.f32 %v1098, %v1102
        %v1104 = vpack.c.bf16 %v1103, %v1103
        %1105 = vrot.lane.b32.xlu0 %v394, 72
        %v1106 = vpop.permute.xlu0 %1105
        %v1109 = vsel %vm442, %v1104, 0
        %1111 = vmatprep.subr.bf16.mxu0 0
        %1112 = vmatpush1.bf16.msra.mxu0 %v1106
        %1113 = vmatprep.subr.bf16.mxu0 0
        %1114 = vmatpush1.bf16.msra.mxu0 0
        %1115 = vmatprep.subr.bf16.mxu0 0
        %1116 = vmatpush1.bf16.msra.mxu0 0
        %1117 = vmatprep.subr.bf16.mxu0 0
        %1118 = vmatpush1.bf16.msra.mxu0 0
        %1119 = vmatprep.subr.bf16.mxu0 0
        %1120 = vmatpush1.bf16.msra.mxu0 0
        %1121 = vmatprep.subr.bf16.mxu0 0
        %1122 = vmatpush1.bf16.msra.mxu0 0
        %1123 = vmatprep.subr.bf16.mxu0 0
        %1124 = vmatpush1.bf16.msra.mxu0 0
        %1125 = vmatprep.subr.bf16.mxu0 0
        %1126 = vmatpush1.bf16.msra.mxu0 0
        %1127 = vmatprep.subr.bf16.mxu0 0
        %1128 = vmatpush1.bf16.msra.mxu0 0
        %1129 = vmatprep.subr.bf16.mxu0 0
        %1130 = vmatpush1.bf16.msra.mxu0 0
        %1131 = vmatprep.subr.bf16.mxu0 0
        %1132 = vmatpush1.bf16.msra.mxu0 0
        %1133 = vmatprep.subr.bf16.mxu0 0
        %1134 = vmatpush1.bf16.msra.mxu0 0
        %1135 = vmatprep.subr.bf16.mxu0 0
        %1136 = vmatpush1.bf16.msra.mxu0 0
        %1137 = vmatprep.subr.bf16.mxu0 0
        %1138 = vmatpush1.bf16.msra.mxu0 0
        %1139 = vmatprep.subr.bf16.mxu0 0
        %1140 = vmatpush1.bf16.msra.mxu0 0
        %1141 = vmatprep.subr.bf16.mxu0 0
        %1142 = vmatpush1.bf16.msra.mxu0 0
        %1143 = vmatprep.mubr.bf16.mxu0 0
        %1144 = vmatmul.mubr.bf16.gmra.mrb[0].mxu0 %v1109
        %v1145 = vpop.f32.mrb[0].mxu0
        %v1146 = vadd.f32 0.0, %v1145
        %v1147 = vpop.f32.mrb[0].mxu0
        %v1148 = vpop.f32.mrb[0].mxu0
        %v1149 = vpop.f32.mrb[0].mxu0
        %1150 = vdwg.mxu0
        %1151 = vrot.lane.b32.xlu0 %v393, 100
        %v1152 = vpop.permute.xlu0 %1151
        %1153 = vrot.lane.b32.xlu0 %v394, 100
        %v1154 = vpop.permute.xlu0 %1153
        %v1156 = vsel %vm395, %v1152, 0
        %v1159 = vsel %vm395, %v1154, 0
        %1161 = vmatprep.subr.bf16.mxu0 0
        %1162 = vmatpush1.bf16.xpose.msra.mxu0 %v1159
        %1163 = vmatprep.subr.bf16.mxu0 0
        %1164 = vmatpush1.bf16.xpose.msra.mxu0 0
        %1165 = vmatprep.subr.bf16.mxu0 0
        %1166 = vmatpush1.bf16.xpose.msra.mxu0 0
        %1167 = vmatprep.subr.bf16.mxu0 0
        %1168 = vmatpush1.bf16.xpose.msra.mxu0 0
        %1169 = vmatprep.subr.bf16.mxu0 0
        %1170 = vmatpush1.bf16.xpose.msra.mxu0 0
        %1171 = vmatprep.subr.bf16.mxu0 0
        %1172 = vmatpush1.bf16.xpose.msra.mxu0 0
        %1173 = vmatprep.subr.bf16.mxu0 0
        %1174 = vmatpush1.bf16.xpose.msra.mxu0 0
        %1175 = vmatprep.subr.bf16.mxu0 0
        %1176 = vmatpush1.bf16.xpose.msra.mxu0 0
        %1177 = vmatprep.subr.bf16.mxu0 0
        %1178 = vmatpush1.bf16.xpose.msra.mxu0 0
        %1179 = vmatprep.subr.bf16.mxu0 0
        %1180 = vmatpush1.bf16.xpose.msra.mxu0 0
        %1181 = vmatprep.subr.bf16.mxu0 0
        %1182 = vmatpush1.bf16.xpose.msra.mxu0 0
        %1183 = vmatprep.subr.bf16.mxu0 0
        %1184 = vmatpush1.bf16.xpose.msra.mxu0 0
        %1185 = vmatprep.subr.bf16.mxu0 0
        %1186 = vmatpush1.bf16.xpose.msra.mxu0 0
        %1187 = vmatprep.subr.bf16.mxu0 0
        %1188 = vmatpush1.bf16.xpose.msra.mxu0 0
        %1189 = vmatprep.subr.bf16.mxu0 0
        %1190 = vmatpush1.bf16.xpose.msra.mxu0 0
        %1191 = vmatprep.subr.bf16.mxu0 0
        %1192 = vmatpush1.bf16.xpose.msra.mxu0 0
        %1193 = vmatprep.mubr.bf16.mxu0 0
        %1194 = vmatmul.mubr.bf16.gmra.mrb[0].mxu0 %v1156
        %v1195 = vpop.f32.mrb[0].mxu0
        %v1196 = vadd.f32 0.0, %v1195
        %v1197 = vpop.f32.mrb[0].mxu0
        %v1198 = vpop.f32.mrb[0].mxu0
        %v1199 = vpop.f32.mrb[0].mxu0
        %1200 = vdwg.mxu0
        %v1201 = vsel %vm442, %v1196, -inf
        %1202 = vmax.xlane.f32.xlu0 %v1201
        %v1203 = vpop.xlane.xlu0 %1202
        %v1204 = vsub.f32 %v1196, %v1203
        %v1205 = vmul.f32 %v1204, 1.442695
        %v1206 = vpow.pop %v1205
        %v1207 = vsel %vm442, %v1206, 0.0
        %1208 = vadd.xlane.f32.xlu0 %v1207
        %v1209 = vpop.xlane.xlu0 %1208
        %v1210 = vrcp.pop %v1209
        %v1211 = vmul.f32 %v1206, %v1210
        %v1212 = vpack.c.bf16 %v1211, %v1211
        %1213 = vrot.lane.b32.xlu0 %v394, 68
        %v1214 = vpop.permute.xlu0 %1213
        %v1217 = vsel %vm442, %v1212, 0
        %1219 = vmatprep.subr.bf16.mxu0 0
        %1220 = vmatpush1.bf16.msra.mxu0 %v1214
        %1221 = vmatprep.subr.bf16.mxu0 0
        %1222 = vmatpush1.bf16.msra.mxu0 0
        %1223 = vmatprep.subr.bf16.mxu0 0
        %1224 = vmatpush1.bf16.msra.mxu0 0
        %1225 = vmatprep.subr.bf16.mxu0 0
        %1226 = vmatpush1.bf16.msra.mxu0 0
        %1227 = vmatprep.subr.bf16.mxu0 0
        %1228 = vmatpush1.bf16.msra.mxu0 0
        %1229 = vmatprep.subr.bf16.mxu0 0
        %1230 = vmatpush1.bf16.msra.mxu0 0
        %1231 = vmatprep.subr.bf16.mxu0 0
        %1232 = vmatpush1.bf16.msra.mxu0 0
        %1233 = vmatprep.subr.bf16.mxu0 0
        %1234 = vmatpush1.bf16.msra.mxu0 0
        %1235 = vmatprep.subr.bf16.mxu0 0
        %1236 = vmatpush1.bf16.msra.mxu0 0
        %1237 = vmatprep.subr.bf16.mxu0 0
        %1238 = vmatpush1.bf16.msra.mxu0 0
        %1239 = vmatprep.subr.bf16.mxu0 0
        %1240 = vmatpush1.bf16.msra.mxu0 0
        %1241 = vmatprep.subr.bf16.mxu0 0
        %1242 = vmatpush1.bf16.msra.mxu0 0
        %1243 = vmatprep.subr.bf16.mxu0 0
        %1244 = vmatpush1.bf16.msra.mxu0 0
        %1245 = vmatprep.subr.bf16.mxu0 0
        %1246 = vmatpush1.bf16.msra.mxu0 0
        %1247 = vmatprep.subr.bf16.mxu0 0
        %1248 = vmatpush1.bf16.msra.mxu0 0
        %1249 = vmatprep.subr.bf16.mxu0 0
        %1250 = vmatpush1.bf16.msra.mxu0 0
        %1251 = vmatprep.mubr.bf16.mxu0 0
        %1252 = vmatmul.mubr.bf16.gmra.mrb[0].mxu0 %v1217
        %v1253 = vpop.f32.mrb[0].mxu0
        %v1254 = vadd.f32 0.0, %v1253
        %v1255 = vpop.f32.mrb[0].mxu0
        %v1256 = vpop.f32.mrb[0].mxu0
        %v1257 = vpop.f32.mrb[0].mxu0
        %1258 = vdwg.mxu0
        %1260 = vrot.lane.b32.xlu0 %v606, 4
        %v1261 = vpop.permute.xlu0 %1260
        %1264 = vrot.lane.b32.xlu0 %v714, 8
        %v1265 = vpop.permute.xlu0 %1264
        %1268 = vrot.lane.b32.xlu0 %v822, 12
        %v1269 = vpop.permute.xlu0 %1268
        %1272 = vrot.lane.b32.xlu0 %v930, 16
        %v1273 = vpop.permute.xlu0 %1272
        %1276 = vrot.lane.b32.xlu0 %v1038, 20
        %v1277 = vpop.permute.xlu0 %1276
        %1280 = vrot.lane.b32.xlu0 %v1146, 24
        %v1281 = vpop.permute.xlu0 %1280
        %1284 = vrot.lane.b32.xlu0 %v1254, 28
        %v1285 = vpop.permute.xlu0 %1284
        %v1287 = vsel %vm395, %v497, %v1261
        %vm1288 = vcmask 64512
        %v1289 = vsel %vm1288, %v1287, %v1265
        %vm1290 = vcmask 97280
        %v1291 = vsel %vm1290, %v1289, %v1269
        %v1292 = vsel %vm442, %v1291, %v1273
        %vm1293 = vcmask 162816
        %v1294 = vsel %vm1293, %v1292, %v1277
        %vm1295 = vcmask 195584
        %v1296 = vsel %vm1295, %v1294, %v1281
        %vm1297 = vcmask 228352
        %v1298 = vsel %vm1297, %v1296, %v1285
        %v1299 = vpack.c.bf16 %v1298, %v1298
        %v1300 = vld [vmem:[%s4] sm:$0xf]
        %v1301 = vld [vmem:[%s4 + $0x4] sm:$0xf]
        %v1302 = vld [vmem:[%s4 + $0x8] sm:$0xf]
        %v1303 = vld [vmem:[%s4 + $0xc] sm:$0xf]
        %v1304 = vld [vmem:[%s5] sm:$0x1]
        %v1306 = vlaneseq
        %v1307 = vshrl.u32 %v1306, 7
        %v1308 = vsub.s32 0, %v1307
        %v1309 = vrot.slane %v1304, %v1308
        %v1315 = vunpack.c.l.b16 %v1300
        %v1316 = vunpack.c.l.b16 %v1301
        %v1317 = vunpack.c.l.b16 %v1302
        %v1318 = vunpack.c.l.b16 %v1303
        %v1319 = vpack.c.b16 %v1316, %v1315
        %v1320 = vpack.c.b16 %v1318, %v1317
        %v1324 = vsel %vm289, %v1299, 0
        %1326 = vmatprep.subr.bf16.mxu0 0
        %1327 = vmatpush1.bf16.msra.mxu0 %v1319
        %1328 = vmatprep.subr.bf16.mxu0 0
        %1329 = vmatpush1.bf16.msra.mxu0 %v1320
        %1330 = vmatprep.subr.bf16.mxu0 0
        %1331 = vmatpush1.bf16.msra.mxu0 0
        %1332 = vmatprep.subr.bf16.mxu0 0
        %1333 = vmatpush1.bf16.msra.mxu0 0
        %1334 = vmatprep.subr.bf16.mxu0 0
        %1335 = vmatpush1.bf16.msra.mxu0 0
        %1336 = vmatprep.subr.bf16.mxu0 0
        %1337 = vmatpush1.bf16.msra.mxu0 0
        %1338 = vmatprep.subr.bf16.mxu0 0
        %1339 = vmatpush1.bf16.msra.mxu0 0
        %1340 = vmatprep.subr.bf16.mxu0 0
        %1341 = vmatpush1.bf16.msra.mxu0 0
        %1342 = vmatprep.subr.bf16.mxu0 0
        %1343 = vmatpush1.bf16.msra.mxu0 0
        %1344 = vmatprep.subr.bf16.mxu0 0
        %1345 = vmatpush1.bf16.msra.mxu0 0
        %1346 = vmatprep.subr.bf16.mxu0 0
        %1347 = vmatpush1.bf16.msra.mxu0 0
        %1348 = vmatprep.subr.bf16.mxu0 0
        %1349 = vmatpush1.bf16.msra.mxu0 0
        %1350 = vmatprep.subr.bf16.mxu0 0
        %1351 = vmatpush1.bf16.msra.mxu0 0
        %1352 = vmatprep.subr.bf16.mxu0 0
        %1353 = vmatpush1.bf16.msra.mxu0 0
        %1354 = vmatprep.subr.bf16.mxu0 0
        %1355 = vmatpush1.bf16.msra.mxu0 0
        %1356 = vmatprep.subr.bf16.mxu0 0
        %1357 = vmatpush1.bf16.msra.mxu0 0
        %1358 = vmatprep.mubr.bf16.mxu0 0
        %1359 = vmatmul.mubr.bf16.gmra.mrb[0].mxu0 %v1324
        %v1360 = vpop.f32.mrb[0].mxu0
        %v1361 = vadd.f32 %v1309, %v1360
        %v1362 = vpop.f32.mrb[0].mxu0
        %v1363 = vpop.f32.mrb[0].mxu0
        %v1364 = vpop.f32.mrb[0].mxu0
        %1365 = vdwg.mxu0
        %1366 = vst.msk [vmem:[%s257] sm:$0xff] %vm289, %v1361
        %s1367 = sand.u32 %s164, 1
        %s1368 = scalar_lea.sflag [#allocation3], %s1367
        %s1369 = sand.u32 %s164, 1
        %s1370 = smul.addr %s1369, 8
        %s1371 = scalar_lea.vmem [#allocation2], %s1370
        // Predicated region
        $region45: #{attention_cross.1} parent=43 // pred_check
          %p1372 = pneg %p174
        $region46: #{attention_cross.1} parent=43 // pred_check_branch
          %1374 = sbr.rel (%p1372) target = $region48
        $region47: #{attention_cross.1} parent=43 // pred_region
          %s1376 = ssub.s32 128, 128
          %1377 = vsyncadd %s1368, %s1376
          %s1378 = smul.addr %s20, 128
          %s1379 = scalar_lea.hbm %s6, %s1378
          %s1381 = sshll.u32 %s1371, 4
          %s1382 = int_to_ptr.vmem [resolvable:$true] %s1381
          %1384 = dma.vmem_to_hbm [thread:$0]  %s1382, 128, %s1379, %s1368
        $region48: #{attention_cross.1} parent=43 // pred_fallthru
          _
      $region44: #{attention_cross.1} parent=5 // pred_fallthru
        _
      %p1385 = scmp.le.s32.totalorder 2, %s15
      // Predicated region
      $region49: #{attention_cross.1} parent=5 // pred_check
        %p1386 = pneg %p1385
      $region50: #{attention_cross.1} parent=5 // pred_check_branch
        %1388 = sbr.rel (%p1386) target = $region52
      $region51: #{attention_cross.1} parent=5 // pred_region
        %s1389 = ssub.s32 %s15, 2
        // Predicated region
        $region53: #{attention_cross.1} parent=51 // pred_check
          %p1390 = pneg %p180
        $region54: #{attention_cross.1} parent=51 // pred_check_branch
          %1392 = sbr.rel (%p1390) target = $region56
        $region55: #{attention_cross.1} parent=51 // pred_region
          %s1393 = sand.u32 %s165, 1
          %s1394 = scalar_lea.sflag [#allocation3], %s1393
          %s1395 = sand.u32 %s165, 1
          %s1396 = smul.addr %s1395, 8
          %s1397 = scalar_lea.vmem [#allocation2], %s1396
          %1398 = dma.done %s1394, 128
        $region56: #{attention_cross.1} parent=51 // pred_fallthru
          _
      $region52: #{attention_cross.1} parent=5 // pred_fallthru
        _
    $region6: #{attention_cross.1} parent=1 // loop_footer
      %s19 = sadd.s32 1, %s15
    $region7: #{attention_cross.1} parent=1 // loop_footer_branch
      %14 = sbr.rel target = $region3
    $region8: #{attention_cross.1} parent=1 // loop_exit
      _
    %1399 = vsyncpa [#allocation3], 1
    %s1400 = scalar_lea.sflag [#allocation3], 1
    %1401 = vsyncpa %s1400, 1

</llo_original>
